<compile_context>
chip_gen: v7x
topology: tpu7x:2x2x1
jax: 0.10.0
libtpu: 0.0.40
codegen_flags: <defaults>
</compile_context>

<pallas_src>
import functools
import numpy as np
import jax
import jax.numpy as jnp
from jax import lax
from jax.experimental import pallas as pl
from jax.experimental.pallas import tpu as pltpu


# --------------------------------------------------------------------------
# Small helpers
# --------------------------------------------------------------------------
def _round_up(x, m):
    return ((x + m - 1) // m) * m


def _largest_div(n, cap):
    """Largest multiple-of-128 divisor of n (n itself a multiple of 128), <= cap."""
    d = max(128, (min(n, cap) // 128) * 128)
    while d > 128 and n % d != 0:
        d -= 128
    return d


def _vmem_limit_bytes():
    # Generation-aware VMEM limit (3/4 of physical): ~96 MiB on v5e/v6e,
    # ~48 MiB on v7x.  Queried at trace time (not import time) so AOT compiles
    # and mixed fleets get the right budget.  Conservative fallback = v7x.
    try:
        cap = int(pltpu.get_tpu_info().vmem_capacity_bytes)
    except Exception:
        cap = 64 * 1024 * 1024
    return cap * 3 // 4


def _flash_vmem_bytes(tq, tkv, cqp, cp):
    q = 2 * tq * cqp * 2            # double-buffered bf16 Q block
    k = 2 * tkv * cqp * 2           # double-buffered bf16 K block
    v = 2 * tkv * cp * 2            # double-buffered bf16 V block
    b = 2 * tkv * 4                 # streamed KV-pad bias
    o = 2 * tq * cp * 4             # resident/double-buffered f32 output block
    acc = tq * cp * 4               # f32 accumulator scratch
    stats = 2 * tq * 128 * 4        # lane-replicated m / l stats
    return q + k + v + b + o + acc + stats


def _mm_vmem_bytes(tm, tk, n_cols, cqp, cp):
    a = 2 * tm * tk * 2             # bf16 activation block
    w = 2 * tk * n_cols * 2         # bf16 weight block (full N)
    bias = 2 * n_cols * 4
    outs = 2 * tm * (2 * cqp + cp) * 2   # bf16 q/k/v output blocks
    acc = tm * n_cols * 4           # f32 accumulator scratch
    return a + w + bias + outs + acc


def _attn_tiles(hw, cqp, cp, batch, budget):
    """Pick (TQ, TKV) with TKV a multiple of TQ, both multiples of 16, within budget."""
    if hw <= 512:
        tq = tkv = max(16, _round_up(hw, 16))
    else:
        tq = 512
        tkv = min(_round_up(hw, tq), 2048)
    # Shrink for the per-generation VMEM budget (matters on v7x with large C).
    while _flash_vmem_bytes(tq, tkv, cqp, cp) > budget and tkv > tq:
        tkv = max(tq, (tkv // 2) // tq * tq)
    while _flash_vmem_bytes(tq, tkv, cqp, cp) > budget and tq > 16:
        tq = max(16, tq // 2)
    # Keep >= 2 parallel work units so v7x's second TensorCore is not idle.
    if batch * (_round_up(hw, tkv) // tq) < 2 and tq >= 32:
        tq //= 2
    return tq, tkv


# --------------------------------------------------------------------------
# Pallas kernel 1: fused Q/K/V 1x1 projection
#   bf16 activations x bf16 fused weight -> f32 scratch accumulate (+bias)
#   -> three bf16 outputs (q, k, v) sliced on 128-aligned column boundaries.
# --------------------------------------------------------------------------
def _qkv_proj_kernel(a_ref, w_ref, bias_ref, q_ref, k_ref, v_ref, acc_ref, *, cqp):
    kk = pl.program_id(1)

    @pl.when(kk == 0)
    def _():
        acc_ref[...] = jnp.zeros_like(acc_ref)

    acc_ref[...] += jnp.dot(a_ref[...], w_ref[...],
                            preferred_element_type=jnp.float32)

    @pl.when(kk == pl.num_programs(1) - 1)
    def _():
        y = acc_ref[...] + bias_ref[...]
        q_ref[...] = y[:, :cqp].astype(q_ref.dtype)
        k_ref[...] = y[:, cqp:2 * cqp].astype(k_ref.dtype)
        v_ref[...] = y[:, 2 * cqp:].astype(v_ref.dtype)


def qkv_projection(a_p, w_pad, b_pad, cqp, cp, tm, vmem_limit):
    """a_p: (M, Kp) bf16 (rows/cols pre-padded); returns q,k,v bf16 of shapes
    (M, cqp), (M, cqp), (M, cp)."""
    m_tot, kp = a_p.shape
    n_cols = w_pad.shape[1]
    budget = vmem_limit // 2

    tk = _largest_div(kp, 1024)
    while _mm_vmem_bytes(tm, tk, n_cols, cqp, cp) > budget and tk > 128:
        tk = _largest_div(kp, max(128, tk // 2))
    while _mm_vmem_bytes(tm, tk, n_cols, cqp, cp) > budget and tm > 16:
        tm //= 2

    grid = (m_tot // tm, kp // tk)          # reduction axis (K) last
    q, k, v = pl.pallas_call(
        functools.partial(_qkv_proj_kernel, cqp=cqp),
        out_shape=(jax.ShapeDtypeStruct((m_tot, cqp), jnp.bfloat16),
                   jax.ShapeDtypeStruct((m_tot, cqp), jnp.bfloat16),
                   jax.ShapeDtypeStruct((m_tot, cp), jnp.bfloat16)),
        grid_spec=pltpu.PrefetchScalarGridSpec(
            num_scalar_prefetch=0,
            grid=grid,
            in_specs=[
                pl.BlockSpec((tm, tk), lambda i, kk: (i, kk)),
                pl.BlockSpec((tk, n_cols), lambda i, kk: (kk, 0)),
                pl.BlockSpec((1, n_cols), lambda i, kk: (0, 0)),
            ],
            out_specs=(
                pl.BlockSpec((tm, cqp), lambda i, kk: (i, 0)),
                pl.BlockSpec((tm, cqp), lambda i, kk: (i, 0)),
                pl.BlockSpec((tm, cp), lambda i, kk: (i, 0)),
            ),
            scratch_shapes=[pltpu.VMEM((tm, n_cols), jnp.float32)],
        ),
        compiler_params=pltpu.CompilerParams(
            dimension_semantics=("parallel", "arbitrary"),
            vmem_limit_bytes=vmem_limit),
    )(a_p, w_pad, b_pad)
    return q, k, v


# --------------------------------------------------------------------------
# Pallas kernel 2: flash-style attention  softmax(Q K^T) @ V  (per batch)
# --------------------------------------------------------------------------
def _flash_attn_kernel(*refs, has_bias):
    if has_bias:
        q_ref, k_ref, v_ref, bias_ref, o_ref, m_sc, l_sc, acc_sc = refs
    else:
        q_ref, k_ref, v_ref, o_ref, m_sc, l_sc, acc_sc = refs
        bias_ref = None
    ki = pl.program_id(2)

    @pl.when(ki == 0)
    def _():
        m_sc[...] = jnp.full_like(m_sc, -jnp.inf)
        l_sc[...] = jnp.zeros_like(l_sc)
        acc_sc[...] = jnp.zeros_like(acc_sc)

    s = lax.dot_general(q_ref[0], k_ref[0], (((1,), (1,)), ((), ())),
                        preferred_element_type=jnp.float32)   # (TQ, TKV) f32
    if bias_ref is not None:
        s = s + bias_ref[...]          # (1, TKV) additive -inf pad mask

    m_prev = m_sc[:, 0:1]
    l_prev = l_sc[:, 0:1]
    m_new = jnp.maximum(m_prev, jnp.max(s, axis=-1, keepdims=True))
    alpha = jnp.exp(m_prev - m_new)
    p = jnp.exp(s - m_new)
    l_new = alpha * l_prev + jnp.sum(p, axis=-1, keepdims=True)
    acc_sc[...] = alpha * acc_sc[...] + jnp.dot(
        p.astype(jnp.bfloat16), v_ref[0], preferred_element_type=jnp.float32)
    # Lane-replicated stat stores (full-vreg stores, no 1-lane masked vst).
    m_sc[...] = jnp.broadcast_to(m_new, m_sc.shape)
    l_sc[...] = jnp.broadcast_to(l_new, l_sc.shape)

    @pl.when(ki == pl.num_programs(2) - 1)
    def _():
        o_ref[0] = acc_sc[...] * pl.reciprocal(l_sc[:, 0:1], approx=True)


def flash_attention(q, k, v, hw, lp, tq, tkv, cqp, cp, vmem_limit):
    """q, k: (B, Lp, cqp) bf16, v: (B, Lp, cp) bf16. Returns (B, Lp, cp) f32."""
    batch = q.shape[0]
    has_pad = lp != hw

    in_specs = [
        pl.BlockSpec((1, tq, cqp), lambda b, qi, ki: (b, qi, 0)),
        pl.BlockSpec((1, tkv, cqp), lambda b, qi, ki: (b, ki, 0)),
        pl.BlockSpec((1, tkv, cp), lambda b, qi, ki: (b, ki, 0)),
    ]
    operands = [q, k, v]
    if has_pad:
        abias = jnp.concatenate(
            [jnp.zeros((1, hw), jnp.float32),
             jnp.full((1, lp - hw), -1e30, jnp.float32)], axis=1)
        in_specs.append(pl.BlockSpec((1, tkv), lambda b, qi, ki: (0, ki)))
        operands.append(abias)

    out = pl.pallas_call(
        functools.partial(_flash_attn_kernel, has_bias=has_pad),
        out_shape=jax.ShapeDtypeStruct((batch, lp, cp), jnp.float32),
        grid_spec=pltpu.PrefetchScalarGridSpec(
            num_scalar_prefetch=0,
            grid=(batch, lp // tq, lp // tkv),     # KV reduction axis last
            in_specs=in_specs,
            out_specs=pl.BlockSpec((1, tq, cp), lambda b, qi, ki: (b, qi, 0)),
            scratch_shapes=[
                pltpu.VMEM((tq, 128), jnp.float32),   # running max (lane-replicated)
                pltpu.VMEM((tq, 128), jnp.float32),   # running denom
                pltpu.VMEM((tq, cp), jnp.float32),    # running numerator
            ],
        ),
        compiler_params=pltpu.CompilerParams(
            dimension_semantics=("parallel", "parallel", "arbitrary"),
            vmem_limit_bytes=vmem_limit),
    )(*operands)
    return out


# --------------------------------------------------------------------------
# Projection + attention orchestration (shared tiling / padding decisions)
# --------------------------------------------------------------------------
def rw_attention(a, w_pad, b_pad):
    """a: (B, hw, C) f32 channels-last activations.  Returns (B, hw, C) f32."""
    batch, hw, c = a.shape
    cq = c // 8
    cqp = _round_up(cq, 128)
    cp = _round_up(c, 128)
    kp, n_cols = w_pad.shape
    assert n_cols == 2 * cqp + cp

    vmem_limit = _vmem_limit_bytes()
    budget = vmem_limit // 2
    tq, tkv = _attn_tiles(hw, cqp, cp, batch, budget)
    lp = _round_up(hw, tkv)            # multiple of tkv (and of tq)
    tm = min(tkv, 1024)                # divides lp

    a_bf = a.astype(jnp.bfloat16)
    if lp == hw and kp == c:
        a_p = a_bf.reshape(batch * lp, kp)          # skip the pad copy when aligned
    else:
        a_p = jnp.zeros((batch, lp, kp), jnp.bfloat16).at[:, :hw, :c].set(a_bf)
        a_p = a_p.reshape(batch * lp, kp)

    q, k, v = qkv_projection(a_p, w_pad, b_pad, cqp, cp, tm, vmem_limit)
    q = q.reshape(batch, lp, cqp)
    k = k.reshape(batch, lp, cqp)
    v = v.reshape(batch, lp, cp)

    o = flash_attention(q, k, v, hw, lp, tq, tkv, cqp, cp, vmem_limit)
    return o[:, :hw, :c]


# --------------------------------------------------------------------------
# JAX glue: bilinear resize (NHWC, PyTorch F.interpolate align_corners=True)
# TODO(synk): bilinear resampling (gather with data-independent weights) is
# kept as plain-JAX glue; no clean Pallas BlockSpec tiling at these sizes.
# --------------------------------------------------------------------------
def _bilinear_coords(out_size, in_size, align_corners):
    o = np.arange(out_size, dtype=np.float64)
    if align_corners:
        src = np.zeros(out_size) if out_size == 1 else o * (in_size - 1) / (out_size - 1)
    else:
        src = np.maximum((o + 0.5) * (in_size / out_size) - 0.5, 0.0)
    i0 = np.clip(np.floor(src).astype(np.int32), 0, in_size - 1)
    i1 = np.minimum(i0 + 1, in_size - 1)
    w1 = (src - i0).astype(np.float32)
    w0 = (1.0 - w1).astype(np.float32)
    return i0, i1, w0, w1


def bilinear_resize_nhwc(x, out_h, out_w, align_corners=True):
    b, h, w, c = x.shape
    if (h, w) == (out_h, out_w):
        return x
    yi0, yi1, yw0, yw1 = _bilinear_coords(out_h, h, align_corners)
    xi0, xi1, xw0, xw1 = _bilinear_coords(out_w, w, align_corners)
    rows = (x[:, yi0, :, :] * yw0[None, :, None, None]
            + x[:, yi1, :, :] * yw1[None, :, None, None])
    return (rows[:, :, xi0, :] * xw0[None, None, :, None]
            + rows[:, :, xi1, :] * xw1[None, None, :, None])


# --------------------------------------------------------------------------
# Deterministic parameters (PyTorch-style Conv2d default init, synthesized)
# --------------------------------------------------------------------------
def make_rw_params(in_dim, seed=0):
    rng = np.random.default_rng(seed)
    cq = in_dim // 8

    def conv1x1(cout, cin):
        bound = 1.0 / np.sqrt(cin)
        w = rng.uniform(-bound, bound, (cout, cin)).astype(np.float32)
        b = rng.uniform(-bound, bound, (cout,)).astype(np.float32)
        return w, b

    wq, bq = conv1x1(cq, in_dim)
    wk, bk = conv1x1(cq, in_dim)
    wv, bv = conv1x1(in_dim, in_dim)

    # Fused Q/K/V weight, pre-transposed / pre-padded so Q, K and V each start
    # on a 128-aligned column boundary (what the kernels consume), bf16 once.
    cqp = _round_up(cq, 128)
    cp = _round_up(in_dim, 128)
    kp = _round_up(in_dim, 128)
    n_cols = 2 * cqp + cp
    w_pad = np.zeros((kp, n_cols), np.float32)
    b_pad = np.zeros((1, n_cols), np.float32)
    w_pad[:in_dim, 0:cq] = wq.T
    w_pad[:in_dim, cqp:cqp + cq] = wk.T
    w_pad[:in_dim, 2 * cqp:2 * cqp + in_dim] = wv.T
    b_pad[0, 0:cq] = bq
    b_pad[0, cqp:cqp + cq] = bk
    b_pad[0, 2 * cqp:2 * cqp + in_dim] = bv

    w_full = np.concatenate([wq, wk, wv], axis=0).T        # (C, 2cq+C) f32
    b_full = np.concatenate([bq, bk, bv], axis=0)

    return {
        "w_qkv": jnp.asarray(w_pad, jnp.bfloat16),
        "b_qkv": jnp.asarray(b_pad, jnp.float32),
        "w_full": jnp.asarray(w_full, jnp.float32),   # f32 copies for the reference
        "b_full": jnp.asarray(b_full, jnp.float32),
        "gamma": jnp.zeros((), jnp.float32),          # matches nn.Parameter(torch.zeros(1))
    }


# --------------------------------------------------------------------------
# RW_Module forward (NHWC end-to-end, one transpose in / one transpose out)
# --------------------------------------------------------------------------
@functools.partial(jax.jit, static_argnames=("shrink_factor",))
def rw_module_forward(x, w_qkv, b_qkv, gamma, shrink_factor):
    b, c, hh, ww = x.shape
    x_nhwc = jnp.transpose(x, (0, 2, 3, 1))
    xs, h, w = x_nhwc, hh, ww
    if shrink_factor != 1:
        h = (hh - 1) // shrink_factor + 1
        w = (ww - 1) // shrink_factor + 1
        xs = bilinear_resize_nhwc(x_nhwc, h, w, align_corners=True)
    hw = h * w

    o = rw_attention(xs.reshape(b, hw, c), w_qkv, b_qkv)      # (B, hw, C) f32
    out = o.reshape(b, h, w, c)
    if shrink_factor != 1:
        out = bilinear_resize_nhwc(out, hh, ww, align_corners=True)
    res = gamma * out + x_nhwc
    return jnp.transpose(res, (0, 3, 1, 2))


def rw_module_reference(x, w_full, b_full, gamma, shrink_factor):
    """Pure-JAX f32 reference (mirrors the PyTorch forward) for self-checking."""
    b, c, hh, ww = x.shape
    cq = c // 8
    x_nhwc = jnp.transpose(x, (0, 2, 3, 1))
    xs, h, w = x_nhwc, hh, ww
    if shrink_factor != 1:
        h = (hh - 1) // shrink_factor + 1
        w = (ww - 1) // shrink_factor + 1
        xs = bilinear_resize_nhwc(x_nhwc, h, w, align_corners=True)
    hw = h * w
    a = xs.reshape(b, hw, c)
    y = jnp.einsum("bmc,cn->bmn", a, w_full) + b_full
    q, k, v = y[..., :cq], y[..., cq:2 * cq], y[..., 2 * cq:]
    attn = jax.nn.softmax(jnp.einsum("bqc,bkc->bqk", q, k), axis=-1)
    o = jnp.einsum("bqk,bkc->bqc", attn, v)
    out = o.reshape(b, h, w, c)
    if shrink_factor != 1:
        out = bilinear_resize_nhwc(out, hh, ww, align_corners=True)
    res = gamma * out + x_nhwc
    return jnp.transpose(res, (0, 3, 1, 2))


# --------------------------------------------------------------------------
if __name__ == "__main__":
    key = jax.random.PRNGKey(0)
    B, C, H, W = 2, 32, 16, 16          # in_dim=32 (divisible by 8), shrink_factor=2
    shrink_factor = 2
    x = jax.random.normal(key, (B, C, H, W), jnp.float32)

    params = make_rw_params(C, seed=0)

    # Reference initialization (gamma = 0): out must equal x exactly.
    out = rw_module_forward(x, params["w_qkv"], params["b_qkv"], params["gamma"],
                            shrink_factor)
    out = jax.block_until_ready(out)
    assert out.shape == (B, C, H, W)
    assert bool(jnp.all(jnp.isfinite(out)))
    assert bool(jnp.allclose(out, x))

    # Exercise the attention path with nonzero gamma and check against the
    # pure-f32 JAX reference (loose tolerance for bf16 MXU operands).
    gamma_test = jnp.float32(0.5)
    got = rw_module_forward(x, params["w_qkv"], params["b_qkv"], gamma_test,
                            shrink_factor)
    ref = rw_module_reference(x, params["w_full"], params["b_full"], gamma_test,
                              shrink_factor)
    got, ref = jax.block_until_ready((got, ref))
    err = float(jnp.max(jnp.abs(got - ref)))
    scale = float(jnp.max(jnp.abs(ref))) + 1.0
    assert err <= 5e-2 * scale, f"mismatch: max_abs_err={err}, scale={scale}"

    print("KERNEL_OK")
</pallas_src>

<mosaic_0001>
module attributes {stable_mosaic.version = 11 : i64} {
  func.func @_qkv_proj_kernel(%arg0: i32, %arg1: i32, %arg2: memref<64x128xbf16, #tpu.memory_space<vmem>>, %arg3: memref<128x384xbf16, #tpu.memory_space<vmem>>, %arg4: memref<1x384xf32, #tpu.memory_space<vmem>>, %arg5: memref<64x128xbf16, #tpu.memory_space<vmem>>, %arg6: memref<64x128xbf16, #tpu.memory_space<vmem>>, %arg7: memref<64x128xbf16, #tpu.memory_space<vmem>>, %arg8: memref<64x384xf32, #tpu.memory_space<vmem>>) attributes {dimension_semantics = [#tpu.dimension_semantics<parallel>, #tpu.dimension_semantics<arbitrary>], iteration_bounds = array<i64: 2, 1>, scalar_prefetch = 0 : i64, scratch_operands = 1 : i64, tpu.core_type = #tpu.core_type<tc>, window_params = [{transform_indices = @transform_0, window_bounds = array<i64: 64, 128>}, {transform_indices = @transform_1, window_bounds = array<i64: 128, 384>}, {pipeline_mode = #tpu.pipeline_mode<synchronous>, transform_indices = @transform_2, window_bounds = array<i64: 1, 384>}, {transform_indices = @transform_3, window_bounds = array<i64: 64, 128>}, {transform_indices = @transform_4, window_bounds = array<i64: 64, 128>}, {transform_indices = @transform_5, window_bounds = array<i64: 64, 128>}]} {
    %c0_i32 = arith.constant 0 : i32
    %0 = arith.cmpi eq, %arg1, %c0_i32 : i32
    %1 = arith.extui %0 : i1 to i32
    %c0_i32_0 = arith.constant 0 : i32
    %2 = arith.cmpi ne, %1, %c0_i32_0 : i32
    scf.if %2 {
      %cst_10 = arith.constant 0.000000e+00 : f32
      %12 = vector.broadcast %cst_10 : f32 to vector<64x384xf32>
      %c0_11 = arith.constant 0 : index
      %c0_12 = arith.constant 0 : index
      %13 = vector.load %arg8[%c0_11, %c0_12] : memref<64x384xf32, #tpu.memory_space<vmem>>, vector<64x384xf32>
      tpu.vector_store %arg8[%c0_11, %c0_12], %12 {strides = array<i32>} : memref<64x384xf32, #tpu.memory_space<vmem>>, vector<64x384xf32>,
    } else {
    }
    %c0 = arith.constant 0 : index
    %c0_1 = arith.constant 0 : index
    %3 = vector.load %arg8[%c0, %c0_1] : memref<64x384xf32, #tpu.memory_space<vmem>>, vector<64x384xf32>
    %c0_2 = arith.constant 0 : index
    %c0_3 = arith.constant 0 : index
    %4 = vector.load %arg2[%c0_2, %c0_3] : memref<64x128xbf16, #tpu.memory_space<vmem>>, vector<64x128xbf16>
    %c0_4 = arith.constant 0 : index
    %c0_5 = arith.constant 0 : index
    %5 = vector.load %arg3[%c0_4, %c0_5] : memref<128x384xbf16, #tpu.memory_space<vmem>>, vector<128x384xbf16>
    %cst = arith.constant dense<0.000000e+00> : vector<64x384xf32>
    %6 = tpu.matmul %4, %5, %cst {dimension_numbers = #tpu.dot_dimension_numbers<[1], [0], [0], [1], [0, 0, 1, 1], [], []>} : vector<64x128xbf16>, vector<128x384xbf16>, vector<64x384xf32> -> vector<64x384xf32>
    %7 = arith.addf %3, %6 : vector<64x384xf32>
    %c0_6 = arith.constant 0 : index
    %c0_7 = arith.constant 0 : index
    %8 = vector.load %arg8[%c0_6, %c0_7] : memref<64x384xf32, #tpu.memory_space<vmem>>, vector<64x384xf32>
    tpu.vector_store %arg8[%c0_6, %c0_7], %7 {strides = array<i32>} : memref<64x384xf32, #tpu.memory_space<vmem>>, vector<64x384xf32>,
    %c0_i32_8 = arith.constant 0 : i32
    %9 = arith.cmpi eq, %arg1, %c0_i32_8 : i32
    %10 = arith.extui %9 : i1 to i32
    %c0_i32_9 = arith.constant 0 : i32
    %11 = arith.cmpi ne, %10, %c0_i32_9 : i32
    scf.if %11 {
      %c0_10 = arith.constant 0 : index
      %c0_11 = arith.constant 0 : index
      %12 = vector.load %arg8[%c0_10, %c0_11] : memref<64x384xf32, #tpu.memory_space<vmem>>, vector<64x384xf32>
      %c0_12 = arith.constant 0 : index
      %c0_13 = arith.constant 0 : index
      %13 = vector.load %arg4[%c0_12, %c0_13] : memref<1x384xf32, #tpu.memory_space<vmem>>, vector<1x384xf32>
      %14 = vector.broadcast %13 : vector<1x384xf32> to vector<64x384xf32>
      %15 = arith.addf %12, %14 : vector<64x384xf32>
      %16 = vector.extract_strided_slice %15 {offsets = [0, 0], sizes = [64, 128], strides = [1, 1]} : vector<64x384xf32> to vector<64x128xf32>
      %17 = arith.truncf %16 : vector<64x128xf32> to vector<64x128xbf16>
      %c0_14 = arith.constant 0 : index
      %c0_15 = arith.constant 0 : index
      %18 = vector.load %arg5[%c0_14, %c0_15] : memref<64x128xbf16, #tpu.memory_space<vmem>>, vector<64x128xbf16>
      tpu.vector_store %arg5[%c0_14, %c0_15], %17 {strides = array<i32>} : memref<64x128xbf16, #tpu.memory_space<vmem>>, vector<64x128xbf16>,
      %19 = vector.extract_strided_slice %15 {offsets = [0, 128], sizes = [64, 128], strides = [1, 1]} : vector<64x384xf32> to vector<64x128xf32>
      %20 = arith.truncf %19 : vector<64x128xf32> to vector<64x128xbf16>
      %c0_16 = arith.constant 0 : index
      %c0_17 = arith.constant 0 : index
      %21 = vector.load %arg6[%c0_16, %c0_17] : memref<64x128xbf16, #tpu.memory_space<vmem>>, vector<64x128xbf16>
      tpu.vector_store %arg6[%c0_16, %c0_17], %20 {strides = array<i32>} : memref<64x128xbf16, #tpu.memory_space<vmem>>, vector<64x128xbf16>,
      %22 = vector.extract_strided_slice %15 {offsets = [0, 256], sizes = [64, 128], strides = [1, 1]} : vector<64x384xf32> to vector<64x128xf32>
      %23 = arith.truncf %22 : vector<64x128xf32> to vector<64x128xbf16>
      %c0_18 = arith.constant 0 : index
      %c0_19 = arith.constant 0 : index
      %24 = vector.load %arg7[%c0_18, %c0_19] : memref<64x128xbf16, #tpu.memory_space<vmem>>, vector<64x128xbf16>
      tpu.vector_store %arg7[%c0_18, %c0_19], %23 {strides = array<i32>} : memref<64x128xbf16, #tpu.memory_space<vmem>>, vector<64x128xbf16>,
    } else {
    }
    return
  }
  func.func @transform_0(%arg0: i32, %arg1: i32) -> (i32, i32) {
    %c0_i32 = arith.constant 0 : i32
    return %arg0, %arg1 : i32, i32
  }
  func.func @transform_1(%arg0: i32, %arg1: i32) -> (i32, i32) {
    %c0_i32 = arith.constant 0 : i32
    %c0_i32_0 = arith.constant 0 : i32
    return %arg1, %c0_i32 : i32, i32
  }
  func.func @transform_2(%arg0: i32, %arg1: i32) -> (i32, i32) {
    %c0_i32 = arith.constant 0 : i32
    %c0_i32_0 = arith.constant 0 : i32
    %c0_i32_1 = arith.constant 0 : i32
    return %c0_i32, %c0_i32_0 : i32, i32
  }
  func.func @transform_3(%arg0: i32, %arg1: i32) -> (i32, i32) {
    %c0_i32 = arith.constant 0 : i32
    %c0_i32_0 = arith.constant 0 : i32
    return %arg0, %c0_i32 : i32, i32
  }
  func.func @transform_4(%arg0: i32, %arg1: i32) -> (i32, i32) {
    %c0_i32 = arith.constant 0 : i32
    %c0_i32_0 = arith.constant 0 : i32
    return %arg0, %c0_i32 : i32, i32
  }
  func.func @transform_5(%arg0: i32, %arg1: i32) -> (i32, i32) {
    %c0_i32 = arith.constant 0 : i32
    %c0_i32_0 = arith.constant 0 : i32
    return %arg0, %c0_i32 : i32, i32
  }
}

module attributes {stable_mosaic.version = 11 : i64} {
  func.func @_flash_attn_kernel(%arg0: i32, %arg1: i32, %arg2: i32, %arg3: memref<1x64x128xbf16, #tpu.memory_space<vmem>>, %arg4: memref<1x64x128xbf16, #tpu.memory_space<vmem>>, %arg5: memref<1x64x128xbf16, #tpu.memory_space<vmem>>, %arg6: memref<1x64x128xf32, #tpu.memory_space<vmem>>, %arg7: memref<64x128xf32, #tpu.memory_space<vmem>>, %arg8: memref<64x128xf32, #tpu.memory_space<vmem>>, %arg9: memref<64x128xf32, #tpu.memory_space<vmem>>) attributes {dimension_semantics = [#tpu.dimension_semantics<parallel>, #tpu.dimension_semantics<parallel>, #tpu.dimension_semantics<arbitrary>], iteration_bounds = array<i64: 2, 1, 1>, scalar_prefetch = 0 : i64, scratch_operands = 3 : i64, tpu.core_type = #tpu.core_type<tc>, window_params = [{transform_indices = @transform_0, window_bounds = array<i64: 1, 64, 128>}, {transform_indices = @transform_1, window_bounds = array<i64: 1, 64, 128>}, {transform_indices = @transform_2, window_bounds = array<i64: 1, 64, 128>}, {transform_indices = @transform_3, window_bounds = array<i64: 1, 64, 128>}]} {
    %c0_i32 = arith.constant 0 : i32
    %0 = arith.cmpi eq, %arg2, %c0_i32 : i32
    %1 = arith.extui %0 : i1 to i32
    %c0_i32_0 = arith.constant 0 : i32
    %2 = arith.cmpi ne, %1, %c0_i32_0 : i32
    scf.if %2 {
      %cst_26 = arith.constant 0xFF800000 : f32
      %40 = vector.broadcast %cst_26 : f32 to vector<64x128xf32>
      %c0_27 = arith.constant 0 : index
      %c0_28 = arith.constant 0 : index
      %41 = vector.load %arg7[%c0_27, %c0_28] : memref<64x128xf32, #tpu.memory_space<vmem>>, vector<64x128xf32>
      tpu.vector_store %arg7[%c0_27, %c0_28], %40 {strides = array<i32>} : memref<64x128xf32, #tpu.memory_space<vmem>>, vector<64x128xf32>,
      %cst_29 = arith.constant 0.000000e+00 : f32
      %42 = vector.broadcast %cst_29 : f32 to vector<64x128xf32>
      %c0_30 = arith.constant 0 : index
      %c0_31 = arith.constant 0 : index
      %43 = vector.load %arg8[%c0_30, %c0_31] : memref<64x128xf32, #tpu.memory_space<vmem>>, vector<64x128xf32>
      tpu.vector_store %arg8[%c0_30, %c0_31], %42 {strides = array<i32>} : memref<64x128xf32, #tpu.memory_space<vmem>>, vector<64x128xf32>,
      %cst_32 = arith.constant 0.000000e+00 : f32
      %44 = vector.broadcast %cst_32 : f32 to vector<64x128xf32>
      %c0_33 = arith.constant 0 : index
      %c0_34 = arith.constant 0 : index
      %45 = vector.load %arg9[%c0_33, %c0_34] : memref<64x128xf32, #tpu.memory_space<vmem>>, vector<64x128xf32>
      tpu.vector_store %arg9[%c0_33, %c0_34], %44 {strides = array<i32>} : memref<64x128xf32, #tpu.memory_space<vmem>>, vector<64x128xf32>,
    } else {
    }
    %c0 = arith.constant 0 : index
    %c0_1 = arith.constant 0 : index
    %c0_2 = arith.constant 0 : index
    %3 = vector.load %arg3[%c0, %c0_1, %c0_2] : memref<1x64x128xbf16, #tpu.memory_space<vmem>>, vector<1x64x128xbf16>
    %4 = vector.shape_cast %3 : vector<1x64x128xbf16> to vector<64x128xbf16>
    %c0_3 = arith.constant 0 : index
    %c0_4 = arith.constant 0 : index
    %c0_5 = arith.constant 0 : index
    %5 = vector.load %arg4[%c0_3, %c0_4, %c0_5] : memref<1x64x128xbf16, #tpu.memory_space<vmem>>, vector<1x64x128xbf16>
    %6 = vector.shape_cast %5 : vector<1x64x128xbf16> to vector<64x128xbf16>
    %cst = arith.constant dense<0.000000e+00> : vector<64x64xf32>
    %7 = tpu.matmul %4, %6, %cst {dimension_numbers = #tpu.dot_dimension_numbers<[1], [1], [0], [0], [0, 0, 1, 0], [], []>} : vector<64x128xbf16>, vector<64x128xbf16>, vector<64x64xf32> -> vector<64x64xf32>
    %c0_6 = arith.constant 0 : index
    %c0_7 = arith.constant 0 : index
    %8 = vector.load %arg7[%c0_6, %c0_7] : memref<64x128xf32, #tpu.memory_space<vmem>>, vector<64x1xf32>
    %c0_8 = arith.constant 0 : index
    %c0_9 = arith.constant 0 : index
    %9 = vector.load %arg8[%c0_8, %c0_9] : memref<64x128xf32, #tpu.memory_space<vmem>>, vector<64x1xf32>
    %cst_10 = arith.constant dense<0xFF800000> : vector<64xf32>
    %10 = vector.multi_reduction <maximumf>, %7, %cst_10 [1] : vector<64x64xf32> to vector<64xf32>
    %11 = vector.shape_cast %10 : vector<64xf32> to vector<64x1xf32>
    %12 = arith.maximumf %8, %11 : vector<64x1xf32>
    %13 = arith.subf %8, %12 : vector<64x1xf32>
    %14 = math.exp %13 : vector<64x1xf32>
    %15 = vector.broadcast %12 : vector<64x1xf32> to vector<64x64xf32>
    %16 = arith.subf %7, %15 : vector<64x64xf32>
    %17 = math.exp %16 : vector<64x64xf32>
    %18 = arith.mulf %14, %9 : vector<64x1xf32>
    %cst_11 = arith.constant dense<0.000000e+00> : vector<64xf32>
    %19 = vector.multi_reduction <add>, %17, %cst_11 [1] : vector<64x64xf32> to vector<64xf32>
    %20 = vector.shape_cast %19 : vector<64xf32> to vector<64x1xf32>
    %21 = arith.addf %18, %20 : vector<64x1xf32>
    %c0_12 = arith.constant 0 : index
    %c0_13 = arith.constant 0 : index
    %22 = vector.load %arg9[%c0_12, %c0_13] : memref<64x128xf32, #tpu.memory_space<vmem>>, vector<64x128xf32>
    %23 = vector.broadcast %14 : vector<64x1xf32> to vector<64x128xf32>
    %24 = arith.mulf %23, %22 : vector<64x128xf32>
    %25 = arith.truncf %17 : vector<64x64xf32> to vector<64x64xbf16>
    %c0_14 = arith.constant 0 : index
    %c0_15 = arith.constant 0 : index
    %c0_16 = arith.constant 0 : index
    %26 = vector.load %arg5[%c0_14, %c0_15, %c0_16] : memref<1x64x128xbf16, #tpu.memory_space<vmem>>, vector<1x64x128xbf16>
    %27 = vector.shape_cast %26 : vector<1x64x128xbf16> to vector<64x128xbf16>
    %cst_17 = arith.constant dense<0.000000e+00> : vector<64x128xf32>
    %28 = tpu.matmul %25, %27, %cst_17 {dimension_numbers = #tpu.dot_dimension_numbers<[1], [0], [0], [1], [0, 0, 1, 1], [], []>} : vector<64x64xbf16>, vector<64x128xbf16>, vector<64x128xf32> -> vector<64x128xf32>
    %29 = arith.addf %24, %28 : vector<64x128xf32>
    %c0_18 = arith.constant 0 : index
    %c0_19 = arith.constant 0 : index
    %30 = vector.load %arg9[%c0_18, %c0_19] : memref<64x128xf32, #tpu.memory_space<vmem>>, vector<64x128xf32>
    tpu.vector_store %arg9[%c0_18, %c0_19], %29 {strides = array<i32>} : memref<64x128xf32, #tpu.memory_space<vmem>>, vector<64x128xf32>,
    %31 = vector.shape_cast %12 : vector<64x1xf32> to vector<64x1xf32>
    %32 = vector.broadcast %31 : vector<64x1xf32> to vector<64x128xf32>
    %c0_20 = arith.constant 0 : index
    %c0_21 = arith.constant 0 : index
    %33 = vector.load %arg7[%c0_20, %c0_21] : memref<64x128xf32, #tpu.memory_space<vmem>>, vector<64x128xf32>
    tpu.vector_store %arg7[%c0_20, %c0_21], %32 {strides = array<i32>} : memref<64x128xf32, #tpu.memory_space<vmem>>, vector<64x128xf32>,
    %34 = vector.shape_cast %21 : vector<64x1xf32> to vector<64x1xf32>
    %35 = vector.broadcast %34 : vector<64x1xf32> to vector<64x128xf32>
    %c0_22 = arith.constant 0 : index
    %c0_23 = arith.constant 0 : index
    %36 = vector.load %arg8[%c0_22, %c0_23] : memref<64x128xf32, #tpu.memory_space<vmem>>, vector<64x128xf32>
    tpu.vector_store %arg8[%c0_22, %c0_23], %35 {strides = array<i32>} : memref<64x128xf32, #tpu.memory_space<vmem>>, vector<64x128xf32>,
    %c0_i32_24 = arith.constant 0 : i32
    %37 = arith.cmpi eq, %arg2, %c0_i32_24 : i32
    %38 = arith.extui %37 : i1 to i32
    %c0_i32_25 = arith.constant 0 : i32
    %39 = arith.cmpi ne, %38, %c0_i32_25 : i32
    scf.if %39 {
      %c0_26 = arith.constant 0 : index
      %c0_27 = arith.constant 0 : index
      %40 = vector.load %arg9[%c0_26, %c0_27] : memref<64x128xf32, #tpu.memory_space<vmem>>, vector<64x128xf32>
      %c0_28 = arith.constant 0 : index
      %c0_29 = arith.constant 0 : index
      %41 = vector.load %arg8[%c0_28, %c0_29] : memref<64x128xf32, #tpu.memory_space<vmem>>, vector<64x1xf32>
      %42 = tpu.reciprocal %41 {approx = true} : vector<64x1xf32> -> vector<64x1xf32>
      %43 = vector.broadcast %42 : vector<64x1xf32> to vector<64x128xf32>
      %44 = arith.mulf %40, %43 : vector<64x128xf32>
      %c0_30 = arith.constant 0 : index
      %c0_31 = arith.constant 0 : index
      %c0_32 = arith.constant 0 : index
      %45 = vector.load %arg6[%c0_30, %c0_31, %c0_32] : memref<1x64x128xf32, #tpu.memory_space<vmem>>, vector<1x64x128xf32>
      %46 = vector.shape_cast %45 : vector<1x64x128xf32> to vector<64x128xf32>
      %47 = vector.shape_cast %44 : vector<64x128xf32> to vector<1x64x128xf32>
      tpu.vector_store %arg6[%c0_30, %c0_31, %c0_32], %47 {strides = array<i32>} : memref<1x64x128xf32, #tpu.memory_space<vmem>>, vector<1x64x128xf32>,
    } else {
    }
    return
  }
  func.func @transform_0(%arg0: i32, %arg1: i32, %arg2: i32) -> (i32, i32, i32) {
    %c0_i32 = arith.constant 0 : i32
    %c0_i32_0 = arith.constant 0 : i32
    return %arg0, %arg1, %c0_i32 : i32, i32, i32
  }
  func.func @transform_1(%arg0: i32, %arg1: i32, %arg2: i32) -> (i32, i32, i32) {
    %c0_i32 = arith.constant 0 : i32
    %c0_i32_0 = arith.constant 0 : i32
    return %arg0, %arg2, %c0_i32 : i32, i32, i32
  }
  func.func @transform_2(%arg0: i32, %arg1: i32, %arg2: i32) -> (i32, i32, i32) {
    %c0_i32 = arith.constant 0 : i32
    %c0_i32_0 = arith.constant 0 : i32
    return %arg0, %arg2, %c0_i32 : i32, i32, i32
  }
  func.func @transform_3(%arg0: i32, %arg1: i32, %arg2: i32) -> (i32, i32, i32) {
    %c0_i32 = arith.constant 0 : i32
    %c0_i32_0 = arith.constant 0 : i32
    return %arg0, %arg1, %c0_i32 : i32, i32, i32
  }
}

</mosaic_0001>

<llo_original>
// kernel: rw_module_forward.2
$region0: #{rw_module_forward.2}
  #allocation0 [shape = 'u32[]', space=smem, size = 0x4, offset = 0x4, fixed_abs, tag = 'smem constant byte address 0x4 - core index']
  #allocation1 [shape = 'u32[144,128]{1,0:T(1,128)}', space=vmem, size = 0x12000, scoped, tag = 'internal scratch']
  #allocation2 [shape = 'f32[64,384]{1,0:T(8,128)}', space=vmem, size = 0x18000, scoped, tag = 'scratch operand']
  %s0 = inlined_call_operand.vmem [shape: bf16[128,128], index: 0, kind: input, shape index: {}]
  %s1 = inlined_call_operand.vmem [shape: bf16[128,384], index: 1, kind: input, shape index: {}]
  %s2 = inlined_call_operand.vmem [shape: f32[1,384], index: 2, kind: input, shape index: {}]
  %s3 = inlined_call_operand.vmem [shape: bf16[128,128], index: 3, kind: output, shape index: {0}]
  %s4 = inlined_call_operand.vmem [shape: bf16[128,128], index: 4, kind: output, shape index: {1}]
  %s5 = inlined_call_operand.vmem [shape: bf16[128,128], index: 5, kind: output, shape index: {2}]
  %6 = xla_tuple %s3, %s4, %s5
  %s7 = sld [smem:[#allocation0]]
  $region69: #{rw_module_forward.2} parent=0
    _
  %s9 = ssub.s32 1, %s7
  %s10 = scalar_select 0, %s9, %s7
  loop: start=0, step=1, limit=4
  $region2: #{rw_module_forward.2} parent=0 // loop_pre_header
    _
  $region3: #{rw_module_forward.2} parent=0 // loop_header
    %s12 = sphi 0, %s16
    %p13 = scmp.ge.s32.totalorder %s12, 4
    %s19 = sphi 0, %s31
    %s20 = sphi 0, %s27
    %s21 = sphi 0, %s19
    %s22 = sphi 0, %s20
    %s23 = sphi 0, %s21
    %s24 = sphi 0, %s22
    %s36 = sphi 0, %s38
    %s39 = sphi 0, %s36
    %s40 = sphi 0, %s39
    %s56 = sphi 0, %s40
    %s62 = sphi 0, %s64
    %s65 = sphi 0, %s62
    %s66 = sphi 0, %s65
    %s82 = sphi 0, %s66
    %s86 = sphi 0, %s86
    %s88 = sphi 0, %s86
    %s89 = sphi 0, %s88
    %s103 = sphi 0, %s89
    %s109 = sphi 0, %s111
    %s112 = sphi 0, %s109
    %s113 = sphi 0, %s112
    %s129 = sphi 0, %s113
    %s135 = sphi 0, %s137
    %s138 = sphi 0, %s135
    %s139 = sphi 0, %s138
    %s155 = sphi 0, %s139
    %s161 = sphi 0, %s163
    %s164 = sphi 0, %s161
    %s165 = sphi 0, %s164
    %s181 = sphi 0, %s165
  $region4: #{rw_module_forward.2} parent=0 // loop_header_branch
    %15 = sbr.rel (%p13) target = $region8
  $region5: #{rw_module_forward.2} parent=0 // loop_body
    %s17 = ssub.s32 %s12, 1
    %s18 = ssub.s32 %s12, 2
    %s25 = sadd.s32 1, %s20
    %p26 = scmp.ge.s32.totalorder %s25, 1
    %s27 = scalar_select %p26, 0, %s25
    %s28 = sadd.s32 1, %s19
    %s29 = scalar_select %p26, %s28, %s19
    %p30 = scmp.ge.s32.totalorder %s29, 2
    %s31 = scalar_select %p30, 0, %s29
    %s32 = ssub.s32 %s19, %s31
    %s33 = ssub.s32 %s20, %s27
    %s34 = sor.u32 %s32, %s33
    %p35 = scmp.eq.s32.totalorder %s34, 0
    %s37 = sadd.s32 %s36, 1
    %s38 = scalar_select %p35, %s36, %s37
    %p41 = pneg %p35
    %p42 = scmp.eq.s32.totalorder %s12, 1
    %p43 = por %p41, %p42
    %p44 = scmp.ne.s32.totalorder %s36, %s39
    %p45 = scmp.eq.s32.totalorder %s12, 0
    %p46 = por %p44, %p45
    %p47 = scmp.ne.s32.totalorder %s36, %s39
    %p48 = scmp.eq.s32.totalorder %s17, 1
    %p49 = por %p47, %p48
    %p50 = scmp.ne.s32.totalorder %s39, %s40
    %p51 = scmp.eq.s32.totalorder %s17, 0
    %p52 = por %p50, %p51
    %p53 = scmp.ne.s32.totalorder %s39, %s40
    %p54 = scmp.eq.s32.totalorder %s18, 1
    %p55 = por %p53, %p54
    %p57 = scmp.ne.s32.totalorder %s40, %s56
    %p58 = scmp.eq.s32.totalorder %s18, 0
    %p59 = por %p57, %p58
    %s60 = ssub.s32 %s20, %s27
    %p61 = scmp.eq.s32.totalorder %s60, 0
    %s63 = sadd.s32 %s62, 1
    %s64 = scalar_select %p61, %s62, %s63
    %p67 = pneg %p61
    %p68 = scmp.eq.s32.totalorder %s12, 1
    %p69 = por %p67, %p68
    %p70 = scmp.ne.s32.totalorder %s62, %s65
    %p71 = scmp.eq.s32.totalorder %s12, 0
    %p72 = por %p70, %p71
    %p73 = scmp.ne.s32.totalorder %s62, %s65
    %p74 = scmp.eq.s32.totalorder %s17, 1
    %p75 = por %p73, %p74
    %p76 = scmp.ne.s32.totalorder %s65, %s66
    %p77 = scmp.eq.s32.totalorder %s17, 0
    %p78 = por %p76, %p77
    %p79 = scmp.ne.s32.totalorder %s65, %s66
    %p80 = scmp.eq.s32.totalorder %s18, 1
    %p81 = por %p79, %p80
    %p83 = scmp.ne.s32.totalorder %s66, %s82
    %p84 = scmp.eq.s32.totalorder %s18, 0
    %p85 = por %p83, %p84
    %s87 = sadd.s32 %s86, 1
    %p90 = scmp.eq.s32.totalorder %s12, 1
    %p91 = scmp.ne.s32.totalorder %s86, %s88
    %p92 = scmp.eq.s32.totalorder %s12, 0
    %p93 = por %p91, %p92
    %p94 = scmp.ne.s32.totalorder %s86, %s88
    %p95 = scmp.eq.s32.totalorder %s17, 1
    %p96 = por %p94, %p95
    %p97 = scmp.ne.s32.totalorder %s88, %s89
    %p98 = scmp.eq.s32.totalorder %s17, 0
    %p99 = por %p97, %p98
    %p100 = scmp.ne.s32.totalorder %s88, %s89
    %p101 = scmp.eq.s32.totalorder %s18, 1
    %p102 = por %p100, %p101
    %p104 = scmp.ne.s32.totalorder %s89, %s103
    %p105 = scmp.eq.s32.totalorder %s18, 0
    %p106 = por %p104, %p105
    %s107 = ssub.s32 %s19, %s31
    %p108 = scmp.eq.s32.totalorder %s107, 0
    %s110 = sadd.s32 %s109, 1
    %s111 = scalar_select %p108, %s109, %s110
    %p114 = pneg %p108
    %p115 = scmp.eq.s32.totalorder %s12, 1
    %p116 = por %p114, %p115
    %p117 = scmp.ne.s32.totalorder %s109, %s112
    %p118 = scmp.eq.s32.totalorder %s12, 0
    %p119 = por %p117, %p118
    %p120 = scmp.ne.s32.totalorder %s109, %s112
    %p121 = scmp.eq.s32.totalorder %s17, 1
    %p122 = por %p120, %p121
    %p123 = scmp.ne.s32.totalorder %s112, %s113
    %p124 = scmp.eq.s32.totalorder %s17, 0
    %p125 = por %p123, %p124
    %p126 = scmp.ne.s32.totalorder %s112, %s113
    %p127 = scmp.eq.s32.totalorder %s18, 1
    %p128 = por %p126, %p127
    %p130 = scmp.ne.s32.totalorder %s113, %s129
    %p131 = scmp.eq.s32.totalorder %s18, 0
    %p132 = por %p130, %p131
    %s133 = ssub.s32 %s19, %s31
    %p134 = scmp.eq.s32.totalorder %s133, 0
    %s136 = sadd.s32 %s135, 1
    %s137 = scalar_select %p134, %s135, %s136
    %p140 = pneg %p134
    %p141 = scmp.eq.s32.totalorder %s12, 1
    %p142 = por %p140, %p141
    %p143 = scmp.ne.s32.totalorder %s135, %s138
    %p144 = scmp.eq.s32.totalorder %s12, 0
    %p145 = por %p143, %p144
    %p146 = scmp.ne.s32.totalorder %s135, %s138
    %p147 = scmp.eq.s32.totalorder %s17, 1
    %p148 = por %p146, %p147
    %p149 = scmp.ne.s32.totalorder %s138, %s139
    %p150 = scmp.eq.s32.totalorder %s17, 0
    %p151 = por %p149, %p150
    %p152 = scmp.ne.s32.totalorder %s138, %s139
    %p153 = scmp.eq.s32.totalorder %s18, 1
    %p154 = por %p152, %p153
    %p156 = scmp.ne.s32.totalorder %s139, %s155
    %p157 = scmp.eq.s32.totalorder %s18, 0
    %p158 = por %p156, %p157
    %s159 = ssub.s32 %s19, %s31
    %p160 = scmp.eq.s32.totalorder %s159, 0
    %s162 = sadd.s32 %s161, 1
    %s163 = scalar_select %p160, %s161, %s162
    %p166 = pneg %p160
    %p167 = scmp.eq.s32.totalorder %s12, 1
    %p168 = por %p166, %p167
    %p169 = scmp.ne.s32.totalorder %s161, %s164
    %p170 = scmp.eq.s32.totalorder %s12, 0
    %p171 = por %p169, %p170
    %p172 = scmp.ne.s32.totalorder %s161, %s164
    %p173 = scmp.eq.s32.totalorder %s17, 1
    %p174 = por %p172, %p173
    %p175 = scmp.ne.s32.totalorder %s164, %s165
    %p176 = scmp.eq.s32.totalorder %s17, 0
    %p177 = por %p175, %p176
    %p178 = scmp.ne.s32.totalorder %s164, %s165
    %p179 = scmp.eq.s32.totalorder %s18, 1
    %p180 = por %p178, %p179
    %p182 = scmp.ne.s32.totalorder %s165, %s181
    %p183 = scmp.eq.s32.totalorder %s18, 0
    %p184 = por %p182, %p183
    %p185 = scmp.le.s32.totalorder 1, %s12
    %p186 = scmp.lt.s32.totalorder %s12, 3
    %p187 = pnand %p185, %p186
    %p188 = pneg %p187
    // Predicated region
    $region9: #{rw_module_forward.2} parent=5 // pred_check
      _
    $region10: #{rw_module_forward.2} parent=5 // pred_check_branch
      %190 = sbr.rel (%p187) target = $region12
    $region11: #{rw_module_forward.2} parent=5 // pred_region
      %s191 = ssub.s32 %s12, 1
      // Predicated region
      $region13: #{rw_module_forward.2} parent=11 // pred_check
        %p192 = pneg %p78
      $region14: #{rw_module_forward.2} parent=11 // pred_check_branch
        %194 = sbr.rel (%p192) target = $region16
      $region15: #{rw_module_forward.2} parent=11 // pred_region
        %s195 = smul.u32 16, %s22
        %p196 = scmp.lt.s32.totalorder %s195, 15
        %s197 = scalar_select %p196, %s195, 15
        %s198 = smul.addr %s197, 3
        %s199 = smul.addr %s198, 4
        %s200 = scalar_lea.vmem %s1, %s199
        %s201 = smul.u32 16, %s22
      $region16: #{rw_module_forward.2} parent=11 // pred_fallthru
        _
      // Predicated region
      $region17: #{rw_module_forward.2} parent=11 // pred_check
        %p202 = pneg %p99
      $region18: #{rw_module_forward.2} parent=11 // pred_check_branch
        %204 = sbr.rel (%p202) target = $region20
      $region19: #{rw_module_forward.2} parent=11 // pred_region
        _
      $region20: #{rw_module_forward.2} parent=11 // pred_fallthru
        _
    $region12: #{rw_module_forward.2} parent=5 // pred_fallthru
      _
    %p205 = scmp.lt.s32.totalorder %s12, 2
    // Predicated region
    $region21: #{rw_module_forward.2} parent=5 // pred_check
      %p206 = pneg %p205
    $region22: #{rw_module_forward.2} parent=5 // pred_check_branch
      %208 = sbr.rel (%p206) target = $region24
    $region23: #{rw_module_forward.2} parent=5 // pred_region
      // Predicated region
      $region25: #{rw_module_forward.2} parent=23 // pred_check
        %p209 = pneg %p46
      $region26: #{rw_module_forward.2} parent=23 // pred_check_branch
        %211 = sbr.rel (%p209) target = $region28
      $region27: #{rw_module_forward.2} parent=23 // pred_region
        %s212 = smul.u32 8, %s19
        %p213 = scmp.lt.s32.totalorder %s212, 15
        %s214 = scalar_select %p213, %s212, 15
        %p215 = scmp.lt.s32.totalorder %s20, 0
        %s216 = scalar_select %p215, %s20, 0
        %s217 = sadd.s32 %s216, %s214
        %s218 = smul.addr %s217, 4
        %s219 = scalar_lea.vmem %s0, %s218
        %s220 = smul.u32 8, %s19
      $region28: #{rw_module_forward.2} parent=23 // pred_fallthru
        _
    $region24: #{rw_module_forward.2} parent=5 // pred_fallthru
      _
    %p221 = scmp.le.s32.totalorder 1, %s12
    %p222 = scmp.lt.s32.totalorder %s12, 3
    %p223 = pnand %p221, %p222
    %p224 = pneg %p223
    // Predicated region
    $region29: #{rw_module_forward.2} parent=5 // pred_check
      _
    $region30: #{rw_module_forward.2} parent=5 // pred_check_branch
      %226 = sbr.rel (%p223) target = $region32
    $region31: #{rw_module_forward.2} parent=5 // pred_region
      %s227 = ssub.s32 %s12, 1
      %s228 = smul.u32 8, %s21
      %p229 = scmp.lt.s32.totalorder %s228, 15
      %s230 = scalar_select %p229, %s228, 15
      %p231 = scmp.lt.s32.totalorder %s22, 0
      %s232 = scalar_select %p231, %s22, 0
      %s233 = sadd.s32 %s232, %s230
      %s234 = smul.addr %s233, 4
      %s235 = scalar_lea.vmem %s0, %s234
      %p236 = pneg %p52
      %p237 = pneg %p49
      %s238 = smul.u32 16, %s22
      %p239 = scmp.lt.s32.totalorder %s238, 15
      %s240 = scalar_select %p239, %s238, 15
      %s241 = smul.addr %s240, 3
      %s242 = smul.addr %s241, 4
      %s243 = scalar_lea.vmem %s1, %s242
      %p244 = pneg %p78
      %p245 = pneg %p75
      %p246 = pneg %p99
      %p247 = pneg %p96
      %p248 = pneg %p125
      %p249 = pneg %p122
      %s250 = smul.u32 8, %s21
      %p251 = scmp.lt.s32.totalorder %s250, 15
      %s252 = scalar_select %p251, %s250, 15
      %s253 = smul.addr %s252, 4
      %s254 = scalar_lea.vmem %s3, %s253
      %p255 = pneg %p151
      %p256 = pneg %p148
      %s257 = smul.u32 8, %s21
      %p258 = scmp.lt.s32.totalorder %s257, 15
      %s259 = scalar_select %p258, %s257, 15
      %s260 = smul.addr %s259, 4
      %s261 = scalar_lea.vmem %s4, %s260
      %p262 = pneg %p177
      %p263 = pneg %p174
      %s264 = smul.u32 8, %s21
      %p265 = scmp.lt.s32.totalorder %s264, 15
      %s266 = scalar_select %p265, %s264, 15
      %s267 = smul.addr %s266, 4
      %s268 = scalar_lea.vmem %s5, %s267
      %s269 = smul.u32 8, %s21
      %p270 = scmp.lt.s32.totalorder %s269, 15
      %s271 = scalar_select %p270, %s269, 15
      %p272 = scmp.lt.s32.totalorder %s22, 0
      %s273 = scalar_select %p272, %s22, 0
      %s274 = sadd.s32 %s273, %s271
      %s275 = smul.addr %s274, 4
      %s276 = scalar_lea.vmem %s0, %s275
      %s277 = smul.u32 8, %s21
      %s278 = smul.u32 16, %s22
      %p279 = scmp.lt.s32.totalorder %s278, 15
      %s280 = scalar_select %p279, %s278, 15
      %s281 = smul.addr %s280, 3
      %s282 = smul.addr %s281, 4
      %s283 = scalar_lea.vmem %s1, %s282
      %s284 = smul.u32 16, %s22
      %s285 = smul.u32 8, %s21
      %p286 = scmp.lt.s32.totalorder %s285, 15
      %s287 = scalar_select %p286, %s285, 15
      %s288 = smul.addr %s287, 4
      %s289 = scalar_lea.vmem %s3, %s288
      %s290 = smul.u32 8, %s21
      %s291 = smul.u32 8, %s21
      %p292 = scmp.lt.s32.totalorder %s291, 15
      %s293 = scalar_select %p292, %s291, 15
      %s294 = smul.addr %s293, 4
      %s295 = scalar_lea.vmem %s4, %s294
      %s296 = smul.u32 8, %s21
      %s297 = smul.u32 8, %s21
      %p298 = scmp.lt.s32.totalorder %s297, 15
      %s299 = scalar_select %p298, %s297, 15
      %s300 = smul.addr %s299, 4
      %s301 = scalar_lea.vmem %s5, %s300
      %s302 = smul.u32 8, %s21
      %p304 = scmp.eq.s32.totalorder %s22, 0
      // Predicated region
      $region33: #{rw_module_forward.2} parent=31 // pred_check
        %p305 = pneg %p304
      $region34: #{rw_module_forward.2} parent=31 // pred_check_branch
        %307 = sbr.rel (%p305) target = $region36
      $region35: #{rw_module_forward.2} parent=31 // pred_region
        %308 = vst [vmem:[#allocation2] sm:$0xff] 0.0
        %309 = vst [vmem:[#allocation2 + $0x8] sm:$0xff] 0.0
        %310 = vst [vmem:[#allocation2 + $0x10] sm:$0xff] 0.0
        %311 = vst [vmem:[#allocation2 + $0x18] sm:$0xff] 0.0
        %312 = vst [vmem:[#allocation2 + $0x20] sm:$0xff] 0.0
        %313 = vst [vmem:[#allocation2 + $0x28] sm:$0xff] 0.0
        %314 = vst [vmem:[#allocation2 + $0x30] sm:$0xff] 0.0
        %315 = vst [vmem:[#allocation2 + $0x38] sm:$0xff] 0.0
        %316 = vst [vmem:[#allocation2 + $0x40] sm:$0xff] 0.0
        %317 = vst [vmem:[#allocation2 + $0x48] sm:$0xff] 0.0
        %318 = vst [vmem:[#allocation2 + $0x50] sm:$0xff] 0.0
        %319 = vst [vmem:[#allocation2 + $0x58] sm:$0xff] 0.0
        %320 = vst [vmem:[#allocation2 + $0x60] sm:$0xff] 0.0
        %321 = vst [vmem:[#allocation2 + $0x68] sm:$0xff] 0.0
        %322 = vst [vmem:[#allocation2 + $0x70] sm:$0xff] 0.0
        %323 = vst [vmem:[#allocation2 + $0x78] sm:$0xff] 0.0
        %324 = vst [vmem:[#allocation2 + $0x80] sm:$0xff] 0.0
        %325 = vst [vmem:[#allocation2 + $0x88] sm:$0xff] 0.0
        %326 = vst [vmem:[#allocation2 + $0x90] sm:$0xff] 0.0
        %327 = vst [vmem:[#allocation2 + $0x98] sm:$0xff] 0.0
        %328 = vst [vmem:[#allocation2 + $0xa0] sm:$0xff] 0.0
        %329 = vst [vmem:[#allocation2 + $0xa8] sm:$0xff] 0.0
        %330 = vst [vmem:[#allocation2 + $0xb0] sm:$0xff] 0.0
        %331 = vst [vmem:[#allocation2 + $0xb8] sm:$0xff] 0.0
      $region36: #{rw_module_forward.2} parent=31 // pred_fallthru
        _
      %v332 = vld [vmem:[#allocation2] sm:$0xff]
      %v333 = vld [vmem:[#allocation2 + $0x8] sm:$0xff]
      %v334 = vld [vmem:[#allocation2 + $0x10] sm:$0xff]
      %v335 = vld [vmem:[#allocation2 + $0x18] sm:$0xff]
      %v336 = vld [vmem:[#allocation2 + $0x20] sm:$0xff]
      %v337 = vld [vmem:[#allocation2 + $0x28] sm:$0xff]
      %v338 = vld [vmem:[#allocation2 + $0x30] sm:$0xff]
      %v339 = vld [vmem:[#allocation2 + $0x38] sm:$0xff]
      %v340 = vld [vmem:[#allocation2 + $0x40] sm:$0xff]
      %v341 = vld [vmem:[#allocation2 + $0x48] sm:$0xff]
      %v342 = vld [vmem:[#allocation2 + $0x50] sm:$0xff]
      %v343 = vld [vmem:[#allocation2 + $0x58] sm:$0xff]
      %v344 = vld [vmem:[#allocation2 + $0x60] sm:$0xff]
      %v345 = vld [vmem:[#allocation2 + $0x68] sm:$0xff]
      %v346 = vld [vmem:[#allocation2 + $0x70] sm:$0xff]
      %v347 = vld [vmem:[#allocation2 + $0x78] sm:$0xff]
      %v348 = vld [vmem:[#allocation2 + $0x80] sm:$0xff]
      %v349 = vld [vmem:[#allocation2 + $0x88] sm:$0xff]
      %v350 = vld [vmem:[#allocation2 + $0x90] sm:$0xff]
      %v351 = vld [vmem:[#allocation2 + $0x98] sm:$0xff]
      %v352 = vld [vmem:[#allocation2 + $0xa0] sm:$0xff]
      %v353 = vld [vmem:[#allocation2 + $0xa8] sm:$0xff]
      %v354 = vld [vmem:[#allocation2 + $0xb0] sm:$0xff]
      %v355 = vld [vmem:[#allocation2 + $0xb8] sm:$0xff]
      %v356 = vld [vmem:[%s276] sm:$0xf]
      %v357 = vld [vmem:[%s276 + $0x4] sm:$0xf]
      %v358 = vld [vmem:[%s276 + $0x8] sm:$0xf]
      %v359 = vld [vmem:[%s276 + $0xc] sm:$0xf]
      %v360 = vld [vmem:[%s276 + $0x10] sm:$0xf]
      %v361 = vld [vmem:[%s276 + $0x14] sm:$0xf]
      %v362 = vld [vmem:[%s276 + $0x18] sm:$0xf]
      %v363 = vld [vmem:[%s276 + $0x1c] sm:$0xf]
      %v364 = vld [vmem:[%s283] sm:$0xff]
      %v365 = vld [vmem:[%s283 + $0x8] sm:$0xf]
      %v366 = vld [vmem:[%s283 + $0xc] sm:$0xff]
      %v367 = vld [vmem:[%s283 + $0x14] sm:$0xf]
      %v368 = vld [vmem:[%s283 + $0x18] sm:$0xff]
      %v369 = vld [vmem:[%s283 + $0x20] sm:$0xf]
      %v370 = vld [vmem:[%s283 + $0x24] sm:$0xff]
      %v371 = vld [vmem:[%s283 + $0x2c] sm:$0xf]
      %v372 = vld [vmem:[%s283 + $0x30] sm:$0xff]
      %v373 = vld [vmem:[%s283 + $0x38] sm:$0xf]
      %v374 = vld [vmem:[%s283 + $0x3c] sm:$0xff]
      %v375 = vld [vmem:[%s283 + $0x44] sm:$0xf]
      %v376 = vld [vmem:[%s283 + $0x48] sm:$0xff]
      %v377 = vld [vmem:[%s283 + $0x50] sm:$0xf]
      %v378 = vld [vmem:[%s283 + $0x54] sm:$0xff]
      %v379 = vld [vmem:[%s283 + $0x5c] sm:$0xf]
      %v380 = vld [vmem:[%s283 + $0x60] sm:$0xff]
      %v381 = vld [vmem:[%s283 + $0x68] sm:$0xf]
      %v382 = vld [vmem:[%s283 + $0x6c] sm:$0xff]
      %v383 = vld [vmem:[%s283 + $0x74] sm:$0xf]
      %v384 = vld [vmem:[%s283 + $0x78] sm:$0xff]
      %v385 = vld [vmem:[%s283 + $0x80] sm:$0xf]
      %v386 = vld [vmem:[%s283 + $0x84] sm:$0xff]
      %v387 = vld [vmem:[%s283 + $0x8c] sm:$0xf]
      %v388 = vld [vmem:[%s283 + $0x90] sm:$0xff]
      %v389 = vld [vmem:[%s283 + $0x98] sm:$0xf]
      %v390 = vld [vmem:[%s283 + $0x9c] sm:$0xff]
      %v391 = vld [vmem:[%s283 + $0xa4] sm:$0xf]
      %v392 = vld [vmem:[%s283 + $0xa8] sm:$0xff]
      %v393 = vld [vmem:[%s283 + $0xb0] sm:$0xf]
      %v394 = vld [vmem:[%s283 + $0xb4] sm:$0xff]
      %v395 = vld [vmem:[%s283 + $0xbc] sm:$0xf]
      %v404 = vunpack.c.l.b16 %v356
      %v405 = vunpack.c.l.b16 %v357
      %v406 = vunpack.c.l.b16 %v358
      %v407 = vunpack.c.l.b16 %v359
      %v408 = vunpack.c.l.b16 %v360
      %v409 = vunpack.c.l.b16 %v361
      %v410 = vunpack.c.l.b16 %v362
      %v411 = vunpack.c.l.b16 %v363
      %v412 = vpack.c.b16 %v405, %v404
      %v413 = vpack.c.b16 %v407, %v406
      %v414 = vpack.c.b16 %v409, %v408
      %v415 = vpack.c.b16 %v411, %v410
      %v452 = vunpack.c.l.b16 %v364
      %v453 = vunpack.c.h.b16 %v364
      %v454 = vunpack.c.l.b16 %v365
      %v455 = vunpack.c.l.b16 %v366
      %v456 = vunpack.c.h.b16 %v366
      %v457 = vunpack.c.l.b16 %v367
      %v458 = vunpack.c.l.b16 %v368
      %v459 = vunpack.c.h.b16 %v368
      %v460 = vunpack.c.l.b16 %v369
      %v461 = vunpack.c.l.b16 %v370
      %v462 = vunpack.c.h.b16 %v370
      %v463 = vunpack.c.l.b16 %v371
      %v464 = vunpack.c.l.b16 %v372
      %v465 = vunpack.c.h.b16 %v372
      %v466 = vunpack.c.l.b16 %v373
      %v467 = vunpack.c.l.b16 %v374
      %v468 = vunpack.c.h.b16 %v374
      %v469 = vunpack.c.l.b16 %v375
      %v470 = vunpack.c.l.b16 %v376
      %v471 = vunpack.c.h.b16 %v376
      %v472 = vunpack.c.l.b16 %v377
      %v473 = vunpack.c.l.b16 %v378
      %v474 = vunpack.c.h.b16 %v378
      %v475 = vunpack.c.l.b16 %v379
      %v476 = vunpack.c.l.b16 %v380
      %v477 = vunpack.c.h.b16 %v380
      %v478 = vunpack.c.l.b16 %v381
      %v479 = vunpack.c.l.b16 %v382
      %v480 = vunpack.c.h.b16 %v382
      %v481 = vunpack.c.l.b16 %v383
      %v482 = vunpack.c.l.b16 %v384
      %v483 = vunpack.c.h.b16 %v384
      %v484 = vunpack.c.l.b16 %v385
      %v485 = vunpack.c.l.b16 %v386
      %v486 = vunpack.c.h.b16 %v386
      %v487 = vunpack.c.l.b16 %v387
      %v488 = vunpack.c.l.b16 %v388
      %v489 = vunpack.c.h.b16 %v388
      %v490 = vunpack.c.l.b16 %v389
      %v491 = vunpack.c.l.b16 %v390
      %v492 = vunpack.c.h.b16 %v390
      %v493 = vunpack.c.l.b16 %v391
      %v494 = vunpack.c.l.b16 %v392
      %v495 = vunpack.c.h.b16 %v392
      %v496 = vunpack.c.l.b16 %v393
      %v497 = vunpack.c.l.b16 %v394
      %v498 = vunpack.c.h.b16 %v394
      %v499 = vunpack.c.l.b16 %v395
      %v500 = vpack.c.b16 %v455, %v452
      %v501 = vpack.c.b16 %v456, %v453
      %v502 = vpack.c.b16 %v457, %v454
      %v503 = vpack.c.b16 %v461, %v458
      %v504 = vpack.c.b16 %v462, %v459
      %v505 = vpack.c.b16 %v463, %v460
      %v506 = vpack.c.b16 %v467, %v464
      %v507 = vpack.c.b16 %v468, %v465
      %v508 = vpack.c.b16 %v469, %v466
      %v509 = vpack.c.b16 %v473, %v470
      %v510 = vpack.c.b16 %v474, %v471
      %v511 = vpack.c.b16 %v475, %v472
      %v512 = vpack.c.b16 %v479, %v476
      %v513 = vpack.c.b16 %v480, %v477
      %v514 = vpack.c.b16 %v481, %v478
      %v515 = vpack.c.b16 %v485, %v482
      %v516 = vpack.c.b16 %v486, %v483
      %v517 = vpack.c.b16 %v487, %v484
      %v518 = vpack.c.b16 %v491, %v488
      %v519 = vpack.c.b16 %v492, %v489
      %v520 = vpack.c.b16 %v493, %v490
      %v521 = vpack.c.b16 %v497, %v494
      %v522 = vpack.c.b16 %v498, %v495
      %v523 = vpack.c.b16 %v499, %v496
      %548 = vmatprep.subr.bf16.mxu0 %v501
      %549 = vmatpush1.bf16.msra.mxu0 %v500
      %550 = vmatprep.subr.bf16.mxu0 %v504
      %551 = vmatpush1.bf16.msra.mxu0 %v503
      %552 = vmatprep.subr.bf16.mxu0 %v507
      %553 = vmatpush1.bf16.msra.mxu0 %v506
      %554 = vmatprep.subr.bf16.mxu0 %v510
      %555 = vmatpush1.bf16.msra.mxu0 %v509
      %556 = vmatprep.subr.bf16.mxu0 %v513
      %557 = vmatpush1.bf16.msra.mxu0 %v512
      %558 = vmatprep.subr.bf16.mxu0 %v516
      %559 = vmatpush1.bf16.msra.mxu0 %v515
      %560 = vmatprep.subr.bf16.mxu0 %v519
      %561 = vmatpush1.bf16.msra.mxu0 %v518
      %562 = vmatprep.subr.bf16.mxu0 %v522
      %563 = vmatpush1.bf16.msra.mxu0 %v521
      %564 = vmatprep.subr.bf16.mxu0 0
      %565 = vmatpush1.bf16.msra.mxu0 0
      %566 = vmatprep.subr.bf16.mxu0 0
      %567 = vmatpush1.bf16.msra.mxu0 0
      %568 = vmatprep.subr.bf16.mxu0 0
      %569 = vmatpush1.bf16.msra.mxu0 0
      %570 = vmatprep.subr.bf16.mxu0 0
      %571 = vmatpush1.bf16.msra.mxu0 0
      %572 = vmatprep.subr.bf16.mxu0 0
      %573 = vmatpush1.bf16.msra.mxu0 0
      %574 = vmatprep.subr.bf16.mxu0 0
      %575 = vmatpush1.bf16.msra.mxu0 0
      %576 = vmatprep.subr.bf16.mxu0 0
      %577 = vmatpush1.bf16.msra.mxu0 0
      %578 = vmatprep.subr.bf16.mxu0 0
      %579 = vmatpush1.bf16.msra.mxu0 0
      %580 = vmatprep.mubr.bf16.mxu0 0
      %581 = vmatmul.mubr.bf16.gmra.mrb[0].mxu0 %v412
      %v582 = vpop.f32.mrb[0].mxu0
      %v583 = vadd.f32 0.0, %v582
      %v584 = vpop.f32.mrb[0].mxu0
      %v585 = vadd.f32 0.0, %v584
      %v586 = vpop.f32.mrb[0].mxu0
      %v587 = vadd.f32 0.0, %v586
      %v588 = vpop.f32.mrb[0].mxu0
      %v589 = vadd.f32 0.0, %v588
      %590 = vmatprep.mubr.bf16.mxu0 0
      %591 = vmatmul.mubr.bf16.gmra.mrb[0].mxu0 %v413
      %v592 = vpop.f32.mrb[0].mxu0
      %v593 = vadd.f32 0.0, %v592
      %v594 = vpop.f32.mrb[0].mxu0
      %v595 = vadd.f32 0.0, %v594
      %v596 = vpop.f32.mrb[0].mxu0
      %v597 = vadd.f32 0.0, %v596
      %v598 = vpop.f32.mrb[0].mxu0
      %v599 = vadd.f32 0.0, %v598
      %600 = vmatprep.mubr.bf16.mxu0 0
      %601 = vmatmul.mubr.bf16.gmra.mrb[0].mxu0 %v414
      %v602 = vpop.f32.mrb[0].mxu0
      %v603 = vadd.f32 0.0, %v602
      %v604 = vpop.f32.mrb[0].mxu0
      %v605 = vadd.f32 0.0, %v604
      %v606 = vpop.f32.mrb[0].mxu0
      %v607 = vadd.f32 0.0, %v606
      %v608 = vpop.f32.mrb[0].mxu0
      %v609 = vadd.f32 0.0, %v608
      %610 = vmatprep.mubr.bf16.mxu0 0
      %611 = vmatmul.mubr.bf16.gmra.mrb[0].mxu0 %v415
      %v612 = vpop.f32.mrb[0].mxu0
      %v613 = vadd.f32 0.0, %v612
      %v614 = vpop.f32.mrb[0].mxu0
      %v615 = vadd.f32 0.0, %v614
      %v616 = vpop.f32.mrb[0].mxu0
      %v617 = vadd.f32 0.0, %v616
      %v618 = vpop.f32.mrb[0].mxu0
      %v619 = vadd.f32 0.0, %v618
      %620 = vdwg.mxu0
      %621 = vmatprep.subr.bf16.mxu0 0
      %622 = vmatpush1.bf16.msra.mxu0 %v502
      %623 = vmatprep.subr.bf16.mxu0 0
      %624 = vmatpush1.bf16.msra.mxu0 %v505
      %625 = vmatprep.subr.bf16.mxu0 0
      %626 = vmatpush1.bf16.msra.mxu0 %v508
      %627 = vmatprep.subr.bf16.mxu0 0
      %628 = vmatpush1.bf16.msra.mxu0 %v511
      %629 = vmatprep.subr.bf16.mxu0 0
      %630 = vmatpush1.bf16.msra.mxu0 %v514
      %631 = vmatprep.subr.bf16.mxu0 0
      %632 = vmatpush1.bf16.msra.mxu0 %v517
      %633 = vmatprep.subr.bf16.mxu0 0
      %634 = vmatpush1.bf16.msra.mxu0 %v520
      %635 = vmatprep.subr.bf16.mxu0 0
      %636 = vmatpush1.bf16.msra.mxu0 %v523
      %637 = vmatprep.subr.bf16.mxu0 0
      %638 = vmatpush1.bf16.msra.mxu0 0
      %639 = vmatprep.subr.bf16.mxu0 0
      %640 = vmatpush1.bf16.msra.mxu0 0
      %641 = vmatprep.subr.bf16.mxu0 0
      %642 = vmatpush1.bf16.msra.mxu0 0
      %643 = vmatprep.subr.bf16.mxu0 0
      %644 = vmatpush1.bf16.msra.mxu0 0
      %645 = vmatprep.subr.bf16.mxu0 0
      %646 = vmatpush1.bf16.msra.mxu0 0
      %647 = vmatprep.subr.bf16.mxu0 0
      %648 = vmatpush1.bf16.msra.mxu0 0
      %649 = vmatprep.subr.bf16.mxu0 0
      %650 = vmatpush1.bf16.msra.mxu0 0
      %651 = vmatprep.subr.bf16.mxu0 0
      %652 = vmatpush1.bf16.msra.mxu0 0
      %653 = vmatprep.mubr.bf16.mxu0 0
      %654 = vmatmul.mubr.bf16.gmra.mrb[0].mxu0 %v412
      %v655 = vpop.f32.mrb[0].mxu0
      %v656 = vadd.f32 0.0, %v655
      %v657 = vpop.f32.mrb[0].mxu0
      %v658 = vpop.f32.mrb[0].mxu0
      %v659 = vadd.f32 0.0, %v658
      %v660 = vpop.f32.mrb[0].mxu0
      %661 = vmatprep.mubr.bf16.mxu0 0
      %662 = vmatmul.mubr.bf16.gmra.mrb[0].mxu0 %v413
      %v663 = vpop.f32.mrb[0].mxu0
      %v664 = vadd.f32 0.0, %v663
      %v665 = vpop.f32.mrb[0].mxu0
      %v666 = vpop.f32.mrb[0].mxu0
      %v667 = vadd.f32 0.0, %v666
      %v668 = vpop.f32.mrb[0].mxu0
      %669 = vmatprep.mubr.bf16.mxu0 0
      %670 = vmatmul.mubr.bf16.gmra.mrb[0].mxu0 %v414
      %v671 = vpop.f32.mrb[0].mxu0
      %v672 = vadd.f32 0.0, %v671
      %v673 = vpop.f32.mrb[0].mxu0
      %v674 = vpop.f32.mrb[0].mxu0
      %v675 = vadd.f32 0.0, %v674
      %v676 = vpop.f32.mrb[0].mxu0
      %677 = vmatprep.mubr.bf16.mxu0 0
      %678 = vmatmul.mubr.bf16.gmra.mrb[0].mxu0 %v415
      %v679 = vpop.f32.mrb[0].mxu0
      %v680 = vadd.f32 0.0, %v679
      %v681 = vpop.f32.mrb[0].mxu0
      %v682 = vpop.f32.mrb[0].mxu0
      %v683 = vadd.f32 0.0, %v682
      %v684 = vpop.f32.mrb[0].mxu0
      %685 = vdwg.mxu0
      %v686 = vadd.f32 %v332, %v583
      %v687 = vadd.f32 %v333, %v585
      %v688 = vadd.f32 %v334, %v656
      %v689 = vadd.f32 %v335, %v587
      %v690 = vadd.f32 %v336, %v589
      %v691 = vadd.f32 %v337, %v659
      %v692 = vadd.f32 %v338, %v593
      %v693 = vadd.f32 %v339, %v595
      %v694 = vadd.f32 %v340, %v664
      %v695 = vadd.f32 %v341, %v597
      %v696 = vadd.f32 %v342, %v599
      %v697 = vadd.f32 %v343, %v667
      %v698 = vadd.f32 %v344, %v603
      %v699 = vadd.f32 %v345, %v605
      %v700 = vadd.f32 %v346, %v672
      %v701 = vadd.f32 %v347, %v607
      %v702 = vadd.f32 %v348, %v609
      %v703 = vadd.f32 %v349, %v675
      %v704 = vadd.f32 %v350, %v613
      %v705 = vadd.f32 %v351, %v615
      %v706 = vadd.f32 %v352, %v680
      %v707 = vadd.f32 %v353, %v617
      %v708 = vadd.f32 %v354, %v619
      %v709 = vadd.f32 %v355, %v683
      %710 = vst [vmem:[#allocation2] sm:$0xff] %v686
      %711 = vst [vmem:[#allocation2 + $0x8] sm:$0xff] %v687
      %712 = vst [vmem:[#allocation2 + $0x10] sm:$0xff] %v688
      %713 = vst [vmem:[#allocation2 + $0x18] sm:$0xff] %v689
      %714 = vst [vmem:[#allocation2 + $0x20] sm:$0xff] %v690
      %715 = vst [vmem:[#allocation2 + $0x28] sm:$0xff] %v691
      %716 = vst [vmem:[#allocation2 + $0x30] sm:$0xff] %v692
      %717 = vst [vmem:[#allocation2 + $0x38] sm:$0xff] %v693
      %718 = vst [vmem:[#allocation2 + $0x40] sm:$0xff] %v694
      %719 = vst [vmem:[#allocation2 + $0x48] sm:$0xff] %v695
      %720 = vst [vmem:[#allocation2 + $0x50] sm:$0xff] %v696
      %721 = vst [vmem:[#allocation2 + $0x58] sm:$0xff] %v697
      %722 = vst [vmem:[#allocation2 + $0x60] sm:$0xff] %v698
      %723 = vst [vmem:[#allocation2 + $0x68] sm:$0xff] %v699
      %724 = vst [vmem:[#allocation2 + $0x70] sm:$0xff] %v700
      %725 = vst [vmem:[#allocation2 + $0x78] sm:$0xff] %v701
      %726 = vst [vmem:[#allocation2 + $0x80] sm:$0xff] %v702
      %727 = vst [vmem:[#allocation2 + $0x88] sm:$0xff] %v703
      %728 = vst [vmem:[#allocation2 + $0x90] sm:$0xff] %v704
      %729 = vst [vmem:[#allocation2 + $0x98] sm:$0xff] %v705
      %730 = vst [vmem:[#allocation2 + $0xa0] sm:$0xff] %v706
      %731 = vst [vmem:[#allocation2 + $0xa8] sm:$0xff] %v707
      %732 = vst [vmem:[#allocation2 + $0xb0] sm:$0xff] %v708
      %733 = vst [vmem:[#allocation2 + $0xb8] sm:$0xff] %v709
      // Predicated region
      $region37: #{rw_module_forward.2} parent=31 // pred_check
        %p734 = pneg %p304
      $region38: #{rw_module_forward.2} parent=31 // pred_check_branch
        %736 = sbr.rel (%p734) target = $region40
      $region39: #{rw_module_forward.2} parent=31 // pred_region
        %v737 = vld [vmem:[#allocation2] sm:$0xff]
        %v738 = vld [vmem:[#allocation2 + $0x8] sm:$0xff]
        %v739 = vld [vmem:[#allocation2 + $0x10] sm:$0xff]
        %v740 = vld [vmem:[#allocation2 + $0x18] sm:$0xff]
        %v741 = vld [vmem:[#allocation2 + $0x20] sm:$0xff]
        %v742 = vld [vmem:[#allocation2 + $0x28] sm:$0xff]
        %v743 = vld [vmem:[#allocation2 + $0x30] sm:$0xff]
        %v744 = vld [vmem:[#allocation2 + $0x38] sm:$0xff]
        %v745 = vld [vmem:[#allocation2 + $0x40] sm:$0xff]
        %v746 = vld [vmem:[#allocation2 + $0x48] sm:$0xff]
        %v747 = vld [vmem:[#allocation2 + $0x50] sm:$0xff]
        %v748 = vld [vmem:[#allocation2 + $0x58] sm:$0xff]
        %v749 = vld [vmem:[#allocation2 + $0x60] sm:$0xff]
        %v750 = vld [vmem:[#allocation2 + $0x68] sm:$0xff]
        %v751 = vld [vmem:[#allocation2 + $0x70] sm:$0xff]
        %v752 = vld [vmem:[#allocation2 + $0x78] sm:$0xff]
        %v753 = vld [vmem:[#allocation2 + $0x80] sm:$0xff]
        %v754 = vld [vmem:[#allocation2 + $0x88] sm:$0xff]
        %v755 = vld [vmem:[#allocation2 + $0x90] sm:$0xff]
        %v756 = vld [vmem:[#allocation2 + $0x98] sm:$0xff]
        %v757 = vld [vmem:[#allocation2 + $0xa0] sm:$0xff]
        %v758 = vld [vmem:[#allocation2 + $0xa8] sm:$0xff]
        %v759 = vld [vmem:[#allocation2 + $0xb0] sm:$0xff]
        %v760 = vld [vmem:[#allocation2 + $0xb8] sm:$0xff]
        %v761 = vld [vmem:[%s2] sm:$0x7]
        %v763 = vlaneseq
        %v764 = vshrl.u32 %v763, 7
        %v765 = vsub.s32 0, %v764
        %v766 = vrot.slane %v761, %v765
        %v767 = vlaneseq
        %v768 = vshrl.u32 %v767, 7
        %v769 = vsub.s32 1, %v768
        %v770 = vrot.slane %v761, %v769
        %v771 = vlaneseq
        %v772 = vshrl.u32 %v771, 7
        %v773 = vsub.s32 2, %v772
        %v774 = vrot.slane %v761, %v773
        %v778 = vadd.f32 %v737, %v766
        %v779 = vadd.f32 %v738, %v770
        %v780 = vadd.f32 %v739, %v774
        %v781 = vadd.f32 %v740, %v766
        %v782 = vadd.f32 %v741, %v770
        %v783 = vadd.f32 %v742, %v774
        %v784 = vadd.f32 %v743, %v766
        %v785 = vadd.f32 %v744, %v770
        %v786 = vadd.f32 %v745, %v774
        %v787 = vadd.f32 %v746, %v766
        %v788 = vadd.f32 %v747, %v770
        %v789 = vadd.f32 %v748, %v774
        %v790 = vadd.f32 %v749, %v766
        %v791 = vadd.f32 %v750, %v770
        %v792 = vadd.f32 %v751, %v774
        %v793 = vadd.f32 %v752, %v766
        %v794 = vadd.f32 %v753, %v770
        %v795 = vadd.f32 %v754, %v774
        %v796 = vadd.f32 %v755, %v766
        %v797 = vadd.f32 %v756, %v770
        %v798 = vadd.f32 %v757, %v774
        %v799 = vadd.f32 %v758, %v766
        %v800 = vadd.f32 %v759, %v770
        %v801 = vadd.f32 %v760, %v774
        %v802 = vpack.c.bf16 %v781, %v778
        %v803 = vpack.c.bf16 %v787, %v784
        %v804 = vpack.c.bf16 %v793, %v790
        %v805 = vpack.c.bf16 %v799, %v796
        %v810 = vunpack.c.l.b16 %v802
        %v811 = vunpack.c.h.b16 %v802
        %v812 = vunpack.c.l.b16 %v803
        %v813 = vunpack.c.h.b16 %v803
        %v814 = vunpack.c.l.b16 %v804
        %v815 = vunpack.c.h.b16 %v804
        %v816 = vunpack.c.l.b16 %v805
        %v817 = vunpack.c.h.b16 %v805
        %v818 = vpack.c.b16 %v810, %v810
        %v819 = vpack.c.b16 %v811, %v811
        %v820 = vpack.c.b16 %v812, %v812
        %v821 = vpack.c.b16 %v813, %v813
        %v822 = vpack.c.b16 %v814, %v814
        %v823 = vpack.c.b16 %v815, %v815
        %v824 = vpack.c.b16 %v816, %v816
        %v825 = vpack.c.b16 %v817, %v817
        %834 = vst [vmem:[%s289] sm:$0xf] %v818
        %835 = vst [vmem:[%s289 + $0x4] sm:$0xf] %v819
        %836 = vst [vmem:[%s289 + $0x8] sm:$0xf] %v820
        %837 = vst [vmem:[%s289 + $0xc] sm:$0xf] %v821
        %838 = vst [vmem:[%s289 + $0x10] sm:$0xf] %v822
        %839 = vst [vmem:[%s289 + $0x14] sm:$0xf] %v823
        %840 = vst [vmem:[%s289 + $0x18] sm:$0xf] %v824
        %841 = vst [vmem:[%s289 + $0x1c] sm:$0xf] %v825
        %v842 = vpack.c.bf16 %v782, %v779
        %v843 = vpack.c.bf16 %v788, %v785
        %v844 = vpack.c.bf16 %v794, %v791
        %v845 = vpack.c.bf16 %v800, %v797
        %v850 = vunpack.c.l.b16 %v842
        %v851 = vunpack.c.h.b16 %v842
        %v852 = vunpack.c.l.b16 %v843
        %v853 = vunpack.c.h.b16 %v843
        %v854 = vunpack.c.l.b16 %v844
        %v855 = vunpack.c.h.b16 %v844
        %v856 = vunpack.c.l.b16 %v845
        %v857 = vunpack.c.h.b16 %v845
        %v858 = vpack.c.b16 %v850, %v850
        %v859 = vpack.c.b16 %v851, %v851
        %v860 = vpack.c.b16 %v852, %v852
        %v861 = vpack.c.b16 %v853, %v853
        %v862 = vpack.c.b16 %v854, %v854
        %v863 = vpack.c.b16 %v855, %v855
        %v864 = vpack.c.b16 %v856, %v856
        %v865 = vpack.c.b16 %v857, %v857
        %874 = vst [vmem:[%s295] sm:$0xf] %v858
        %875 = vst [vmem:[%s295 + $0x4] sm:$0xf] %v859
        %876 = vst [vmem:[%s295 + $0x8] sm:$0xf] %v860
        %877 = vst [vmem:[%s295 + $0xc] sm:$0xf] %v861
        %878 = vst [vmem:[%s295 + $0x10] sm:$0xf] %v862
        %879 = vst [vmem:[%s295 + $0x14] sm:$0xf] %v863
        %880 = vst [vmem:[%s295 + $0x18] sm:$0xf] %v864
        %881 = vst [vmem:[%s295 + $0x1c] sm:$0xf] %v865
        %v882 = vpack.c.bf16 %v783, %v780
        %v883 = vpack.c.bf16 %v789, %v786
        %v884 = vpack.c.bf16 %v795, %v792
        %v885 = vpack.c.bf16 %v801, %v798
        %v890 = vunpack.c.l.b16 %v882
        %v891 = vunpack.c.h.b16 %v882
        %v892 = vunpack.c.l.b16 %v883
        %v893 = vunpack.c.h.b16 %v883
        %v894 = vunpack.c.l.b16 %v884
        %v895 = vunpack.c.h.b16 %v884
        %v896 = vunpack.c.l.b16 %v885
        %v897 = vunpack.c.h.b16 %v885
        %v898 = vpack.c.b16 %v890, %v890
        %v899 = vpack.c.b16 %v891, %v891
        %v900 = vpack.c.b16 %v892, %v892
        %v901 = vpack.c.b16 %v893, %v893
        %v902 = vpack.c.b16 %v894, %v894
        %v903 = vpack.c.b16 %v895, %v895
        %v904 = vpack.c.b16 %v896, %v896
        %v905 = vpack.c.b16 %v897, %v897
        %914 = vst [vmem:[%s301] sm:$0xf] %v898
        %915 = vst [vmem:[%s301 + $0x4] sm:$0xf] %v899
        %916 = vst [vmem:[%s301 + $0x8] sm:$0xf] %v900
        %917 = vst [vmem:[%s301 + $0xc] sm:$0xf] %v901
        %918 = vst [vmem:[%s301 + $0x10] sm:$0xf] %v902
        %919 = vst [vmem:[%s301 + $0x14] sm:$0xf] %v903
        %920 = vst [vmem:[%s301 + $0x18] sm:$0xf] %v904
        %921 = vst [vmem:[%s301 + $0x1c] sm:$0xf] %v905
      $region40: #{rw_module_forward.2} parent=31 // pred_fallthru
        _
      %s922 = smul.u32 8, %s21
      %p923 = scmp.lt.s32.totalorder %s922, 15
      %s924 = scalar_select %p923, %s922, 15
      %s925 = smul.addr %s924, 4
      %s926 = scalar_lea.vmem %s3, %s925
      %s927 = smul.u32 8, %s21
      %p928 = scmp.lt.s32.totalorder %s927, 15
      %s929 = scalar_select %p928, %s927, 15
      %s930 = smul.addr %s929, 4
      %s931 = scalar_lea.vmem %s4, %s930
      %s932 = smul.u32 8, %s21
      %p933 = scmp.lt.s32.totalorder %s932, 15
      %s934 = scalar_select %p933, %s932, 15
      %s935 = smul.addr %s934, 4
      %s936 = scalar_lea.vmem %s5, %s935
      // Predicated region
      $region41: #{rw_module_forward.2} parent=31 // pred_check
        %p937 = pneg %p122
      $region42: #{rw_module_forward.2} parent=31 // pred_check_branch
        %939 = sbr.rel (%p937) target = $region44
      $region43: #{rw_module_forward.2} parent=31 // pred_region
        %s940 = smul.u32 8, %s21
      $region44: #{rw_module_forward.2} parent=31 // pred_fallthru
        _
      // Predicated region
      $region45: #{rw_module_forward.2} parent=31 // pred_check
        %p941 = pneg %p148
      $region46: #{rw_module_forward.2} parent=31 // pred_check_branch
        %943 = sbr.rel (%p941) target = $region48
      $region47: #{rw_module_forward.2} parent=31 // pred_region
        %s944 = smul.u32 8, %s21
      $region48: #{rw_module_forward.2} parent=31 // pred_fallthru
        _
      // Predicated region
      $region49: #{rw_module_forward.2} parent=31 // pred_check
        %p945 = pneg %p174
      $region50: #{rw_module_forward.2} parent=31 // pred_check_branch
        %947 = sbr.rel (%p945) target = $region52
      $region51: #{rw_module_forward.2} parent=31 // pred_region
        %s948 = smul.u32 8, %s21
      $region52: #{rw_module_forward.2} parent=31 // pred_fallthru
        _
    $region32: #{rw_module_forward.2} parent=5 // pred_fallthru
      _
    %p949 = scmp.le.s32.totalorder 2, %s12
    // Predicated region
    $region53: #{rw_module_forward.2} parent=5 // pred_check
      %p950 = pneg %p949
    $region54: #{rw_module_forward.2} parent=5 // pred_check_branch
      %952 = sbr.rel (%p950) target = $region56
    $region55: #{rw_module_forward.2} parent=5 // pred_region
      %s953 = ssub.s32 %s12, 2
      // Predicated region
      $region57: #{rw_module_forward.2} parent=55 // pred_check
        %p954 = pneg %p128
      $region58: #{rw_module_forward.2} parent=55 // pred_check_branch
        %956 = sbr.rel (%p954) target = $region60
      $region59: #{rw_module_forward.2} parent=55 // pred_region
        %s957 = smul.u32 8, %s23
        %p958 = scmp.lt.s32.totalorder %s957, 15
        %s959 = scalar_select %p958, %s957, 15
        %s960 = smul.addr %s959, 4
        %s961 = scalar_lea.vmem %s3, %s960
      $region60: #{rw_module_forward.2} parent=55 // pred_fallthru
        _
      // Predicated region
      $region61: #{rw_module_forward.2} parent=55 // pred_check
        %p962 = pneg %p154
      $region62: #{rw_module_forward.2} parent=55 // pred_check_branch
        %964 = sbr.rel (%p962) target = $region64
      $region63: #{rw_module_forward.2} parent=55 // pred_region
        %s965 = smul.u32 8, %s23
        %p966 = scmp.lt.s32.totalorder %s965, 15
        %s967 = scalar_select %p966, %s965, 15
        %s968 = smul.addr %s967, 4
        %s969 = scalar_lea.vmem %s4, %s968
      $region64: #{rw_module_forward.2} parent=55 // pred_fallthru
        _
      // Predicated region
      $region65: #{rw_module_forward.2} parent=55 // pred_check
        %p970 = pneg %p180
      $region66: #{rw_module_forward.2} parent=55 // pred_check_branch
        %972 = sbr.rel (%p970) target = $region68
      $region67: #{rw_module_forward.2} parent=55 // pred_region
        %s973 = smul.u32 8, %s23
        %p974 = scmp.lt.s32.totalorder %s973, 15
        %s975 = scalar_select %p974, %s973, 15
        %s976 = smul.addr %s975, 4
        %s977 = scalar_lea.vmem %s5, %s976
      $region68: #{rw_module_forward.2} parent=55 // pred_fallthru
        _
    $region56: #{rw_module_forward.2} parent=5 // pred_fallthru
      _
  $region6: #{rw_module_forward.2} parent=0 // loop_footer
    %s16 = sadd.s32 1, %s12
  $region7: #{rw_module_forward.2} parent=0 // loop_footer_branch
    %11 = sbr.rel target = $region3
  $region8: #{rw_module_forward.2} parent=0 // loop_exit
    _

// kernel: rw_module_forward.3
$region0: #{rw_module_forward.3}
  #allocation0 [shape = 'u32[]', space=smem, size = 0x4, offset = 0x4, fixed_abs, tag = 'smem constant byte address 0x4 - core index']
  #allocation1 [shape = 'u32[144,128]{1,0:T(1,128)}', space=vmem, size = 0x12000, scoped, tag = 'internal scratch']
  #allocation2 [shape = 'f32[64,128]{1,0:T(8,128)}', space=vmem, size = 0x8000, scoped, tag = 'scratch operand']
  #allocation3 [shape = 'f32[64,128]{1,0:T(8,128)}', space=vmem, size = 0x8000, scoped, tag = 'scratch operand']
  #allocation4 [shape = 'f32[64,128]{1,0:T(8,128)}', space=vmem, size = 0x8000, scoped, tag = 'scratch operand']
  %s0 = inlined_call_operand.vmem [shape: bf16[2,64,128], index: 0, kind: input, shape index: {}]
  %s1 = inlined_call_operand.vmem [shape: bf16[2,64,128], index: 1, kind: input, shape index: {}]
  %s2 = inlined_call_operand.vmem [shape: bf16[2,64,128], index: 2, kind: input, shape index: {}]
  %s3 = inlined_call_operand.vmem [shape: f32[2,64,128], index: 3, kind: output, shape index: {}]
  %s4 = sld [smem:[#allocation0]]
  $region53: #{rw_module_forward.3} parent=0
    _
  %s6 = ssub.s32 1, %s4
  %s7 = scalar_select 0, %s6, %s4
  loop: start=0, step=1, limit=4
  $region2: #{rw_module_forward.3} parent=0 // loop_pre_header
    _
  $region3: #{rw_module_forward.3} parent=0 // loop_header
    %s9 = sphi 0, %s13
    %p10 = scmp.ge.s32.totalorder %s9, 4
    %s16 = sphi 0, %s35
    %s17 = sphi 0, %s31
    %s18 = sphi 0, %s27
    %s19 = sphi 0, %s16
    %s20 = sphi 0, %s17
    %s21 = sphi 0, %s18
    %s22 = sphi 0, %s19
    %s23 = sphi 0, %s20
    %s24 = sphi 0, %s21
    %s40 = sphi 0, %s42
    %s43 = sphi 0, %s40
    %s44 = sphi 0, %s43
    %s60 = sphi 0, %s44
    %s68 = sphi 0, %s70
    %s71 = sphi 0, %s68
    %s72 = sphi 0, %s71
    %s88 = sphi 0, %s72
    %s96 = sphi 0, %s98
    %s99 = sphi 0, %s96
    %s100 = sphi 0, %s99
    %s116 = sphi 0, %s100
    %s124 = sphi 0, %s126
    %s127 = sphi 0, %s124
    %s128 = sphi 0, %s127
    %s144 = sphi 0, %s128
  $region4: #{rw_module_forward.3} parent=0 // loop_header_branch
    %12 = sbr.rel (%p10) target = $region8
  $region5: #{rw_module_forward.3} parent=0 // loop_body
    %s14 = ssub.s32 %s9, 1
    %s15 = ssub.s32 %s9, 2
    %s25 = sadd.s32 1, %s18
    %p26 = scmp.ge.s32.totalorder %s25, 1
    %s27 = scalar_select %p26, 0, %s25
    %s28 = sadd.s32 1, %s17
    %s29 = scalar_select %p26, %s28, %s17
    %p30 = scmp.ge.s32.totalorder %s29, 1
    %s31 = scalar_select %p30, 0, %s29
    %s32 = sadd.s32 1, %s16
    %s33 = scalar_select %p30, %s32, %s16
    %p34 = scmp.ge.s32.totalorder %s33, 2
    %s35 = scalar_select %p34, 0, %s33
    %s36 = ssub.s32 %s16, %s35
    %s37 = ssub.s32 %s17, %s31
    %s38 = sor.u32 %s36, %s37
    %p39 = scmp.eq.s32.totalorder %s38, 0
    %s41 = sadd.s32 %s40, 1
    %s42 = scalar_select %p39, %s40, %s41
    %p45 = pneg %p39
    %p46 = scmp.eq.s32.totalorder %s9, 1
    %p47 = por %p45, %p46
    %p48 = scmp.ne.s32.totalorder %s40, %s43
    %p49 = scmp.eq.s32.totalorder %s9, 0
    %p50 = por %p48, %p49
    %p51 = scmp.ne.s32.totalorder %s40, %s43
    %p52 = scmp.eq.s32.totalorder %s14, 1
    %p53 = por %p51, %p52
    %p54 = scmp.ne.s32.totalorder %s43, %s44
    %p55 = scmp.eq.s32.totalorder %s14, 0
    %p56 = por %p54, %p55
    %p57 = scmp.ne.s32.totalorder %s43, %s44
    %p58 = scmp.eq.s32.totalorder %s15, 1
    %p59 = por %p57, %p58
    %p61 = scmp.ne.s32.totalorder %s44, %s60
    %p62 = scmp.eq.s32.totalorder %s15, 0
    %p63 = por %p61, %p62
    %s64 = ssub.s32 %s16, %s35
    %s65 = ssub.s32 %s18, %s27
    %s66 = sor.u32 %s64, %s65
    %p67 = scmp.eq.s32.totalorder %s66, 0
    %s69 = sadd.s32 %s68, 1
    %s70 = scalar_select %p67, %s68, %s69
    %p73 = pneg %p67
    %p74 = scmp.eq.s32.totalorder %s9, 1
    %p75 = por %p73, %p74
    %p76 = scmp.ne.s32.totalorder %s68, %s71
    %p77 = scmp.eq.s32.totalorder %s9, 0
    %p78 = por %p76, %p77
    %p79 = scmp.ne.s32.totalorder %s68, %s71
    %p80 = scmp.eq.s32.totalorder %s14, 1
    %p81 = por %p79, %p80
    %p82 = scmp.ne.s32.totalorder %s71, %s72
    %p83 = scmp.eq.s32.totalorder %s14, 0
    %p84 = por %p82, %p83
    %p85 = scmp.ne.s32.totalorder %s71, %s72
    %p86 = scmp.eq.s32.totalorder %s15, 1
    %p87 = por %p85, %p86
    %p89 = scmp.ne.s32.totalorder %s72, %s88
    %p90 = scmp.eq.s32.totalorder %s15, 0
    %p91 = por %p89, %p90
    %s92 = ssub.s32 %s16, %s35
    %s93 = ssub.s32 %s18, %s27
    %s94 = sor.u32 %s92, %s93
    %p95 = scmp.eq.s32.totalorder %s94, 0
    %s97 = sadd.s32 %s96, 1
    %s98 = scalar_select %p95, %s96, %s97
    %p101 = pneg %p95
    %p102 = scmp.eq.s32.totalorder %s9, 1
    %p103 = por %p101, %p102
    %p104 = scmp.ne.s32.totalorder %s96, %s99
    %p105 = scmp.eq.s32.totalorder %s9, 0
    %p106 = por %p104, %p105
    %p107 = scmp.ne.s32.totalorder %s96, %s99
    %p108 = scmp.eq.s32.totalorder %s14, 1
    %p109 = por %p107, %p108
    %p110 = scmp.ne.s32.totalorder %s99, %s100
    %p111 = scmp.eq.s32.totalorder %s14, 0
    %p112 = por %p110, %p111
    %p113 = scmp.ne.s32.totalorder %s99, %s100
    %p114 = scmp.eq.s32.totalorder %s15, 1
    %p115 = por %p113, %p114
    %p117 = scmp.ne.s32.totalorder %s100, %s116
    %p118 = scmp.eq.s32.totalorder %s15, 0
    %p119 = por %p117, %p118
    %s120 = ssub.s32 %s16, %s35
    %s121 = ssub.s32 %s17, %s31
    %s122 = sor.u32 %s120, %s121
    %p123 = scmp.eq.s32.totalorder %s122, 0
    %s125 = sadd.s32 %s124, 1
    %s126 = scalar_select %p123, %s124, %s125
    %p129 = pneg %p123
    %p130 = scmp.eq.s32.totalorder %s9, 1
    %p131 = por %p129, %p130
    %p132 = scmp.ne.s32.totalorder %s124, %s127
    %p133 = scmp.eq.s32.totalorder %s9, 0
    %p134 = por %p132, %p133
    %p135 = scmp.ne.s32.totalorder %s124, %s127
    %p136 = scmp.eq.s32.totalorder %s14, 1
    %p137 = por %p135, %p136
    %p138 = scmp.ne.s32.totalorder %s127, %s128
    %p139 = scmp.eq.s32.totalorder %s14, 0
    %p140 = por %p138, %p139
    %p141 = scmp.ne.s32.totalorder %s127, %s128
    %p142 = scmp.eq.s32.totalorder %s15, 1
    %p143 = por %p141, %p142
    %p145 = scmp.ne.s32.totalorder %s128, %s144
    %p146 = scmp.eq.s32.totalorder %s15, 0
    %p147 = por %p145, %p146
    %p148 = scmp.le.s32.totalorder 1, %s9
    %p149 = scmp.lt.s32.totalorder %s9, 3
    %p150 = pnand %p148, %p149
    %p151 = pneg %p150
    // Predicated region
    $region9: #{rw_module_forward.3} parent=5 // pred_check
      _
    $region10: #{rw_module_forward.3} parent=5 // pred_check_branch
      %153 = sbr.rel (%p150) target = $region12
    $region11: #{rw_module_forward.3} parent=5 // pred_region
      %s154 = ssub.s32 %s9, 1
    $region12: #{rw_module_forward.3} parent=5 // pred_fallthru
      _
    %p155 = scmp.lt.s32.totalorder %s9, 2
    // Predicated region
    $region13: #{rw_module_forward.3} parent=5 // pred_check
      %p156 = pneg %p155
    $region14: #{rw_module_forward.3} parent=5 // pred_check_branch
      %158 = sbr.rel (%p156) target = $region16
    $region15: #{rw_module_forward.3} parent=5 // pred_region
      // Predicated region
      $region17: #{rw_module_forward.3} parent=15 // pred_check
        %p159 = pneg %p50
      $region18: #{rw_module_forward.3} parent=15 // pred_check_branch
        %161 = sbr.rel (%p159) target = $region20
      $region19: #{rw_module_forward.3} parent=15 // pred_region
        %s162 = smul.u32 8, %s17
        %p163 = scmp.lt.s32.totalorder %s16, 1
        %s164 = scalar_select %p163, %s16, 1
        %p165 = scmp.lt.s32.totalorder %s162, 7
        %s166 = scalar_select %p165, %s162, 7
        %s167 = smul.addr %s164, 8
        %s168 = sadd.s32 %s166, %s167
        %s169 = smul.addr %s168, 4
        %s170 = scalar_lea.vmem %s0, %s169
        %s171 = smul.u32 8, %s17
      $region20: #{rw_module_forward.3} parent=15 // pred_fallthru
        _
      // Predicated region
      $region21: #{rw_module_forward.3} parent=15 // pred_check
        %p172 = pneg %p78
      $region22: #{rw_module_forward.3} parent=15 // pred_check_branch
        %174 = sbr.rel (%p172) target = $region24
      $region23: #{rw_module_forward.3} parent=15 // pred_region
        %s175 = smul.u32 8, %s18
        %p176 = scmp.lt.s32.totalorder %s16, 1
        %s177 = scalar_select %p176, %s16, 1
        %p178 = scmp.lt.s32.totalorder %s175, 7
        %s179 = scalar_select %p178, %s175, 7
        %s180 = smul.addr %s177, 8
        %s181 = sadd.s32 %s179, %s180
        %s182 = smul.addr %s181, 4
        %s183 = scalar_lea.vmem %s1, %s182
        %s184 = smul.u32 8, %s18
      $region24: #{rw_module_forward.3} parent=15 // pred_fallthru
        _
      // Predicated region
      $region25: #{rw_module_forward.3} parent=15 // pred_check
        %p185 = pneg %p106
      $region26: #{rw_module_forward.3} parent=15 // pred_check_branch
        %187 = sbr.rel (%p185) target = $region28
      $region27: #{rw_module_forward.3} parent=15 // pred_region
        %s188 = smul.u32 8, %s18
        %p189 = scmp.lt.s32.totalorder %s16, 1
        %s190 = scalar_select %p189, %s16, 1
        %p191 = scmp.lt.s32.totalorder %s188, 7
        %s192 = scalar_select %p191, %s188, 7
        %s193 = smul.addr %s190, 8
        %s194 = sadd.s32 %s192, %s193
        %s195 = smul.addr %s194, 4
        %s196 = scalar_lea.vmem %s2, %s195
        %s197 = smul.u32 8, %s18
      $region28: #{rw_module_forward.3} parent=15 // pred_fallthru
        _
    $region16: #{rw_module_forward.3} parent=5 // pred_fallthru
      _
    %p198 = scmp.le.s32.totalorder 1, %s9
    %p199 = scmp.lt.s32.totalorder %s9, 3
    %p200 = pnand %p198, %p199
    %p201 = pneg %p200
    // Predicated region
    $region29: #{rw_module_forward.3} parent=5 // pred_check
      _
    $region30: #{rw_module_forward.3} parent=5 // pred_check_branch
      %203 = sbr.rel (%p200) target = $region32
    $region31: #{rw_module_forward.3} parent=5 // pred_region
      %s204 = ssub.s32 %s9, 1
      %s205 = smul.u32 8, %s20
      %p206 = scmp.lt.s32.totalorder %s19, 1
      %s207 = scalar_select %p206, %s19, 1
      %p208 = scmp.lt.s32.totalorder %s205, 7
      %s209 = scalar_select %p208, %s205, 7
      %s210 = smul.addr %s207, 8
      %s211 = sadd.s32 %s209, %s210
      %s212 = smul.addr %s211, 4
      %s213 = scalar_lea.vmem %s0, %s212
      %p214 = pneg %p56
      %p215 = pneg %p53
      %s216 = smul.u32 8, %s21
      %p217 = scmp.lt.s32.totalorder %s19, 1
      %s218 = scalar_select %p217, %s19, 1
      %p219 = scmp.lt.s32.totalorder %s216, 7
      %s220 = scalar_select %p219, %s216, 7
      %s221 = smul.addr %s218, 8
      %s222 = sadd.s32 %s220, %s221
      %s223 = smul.addr %s222, 4
      %s224 = scalar_lea.vmem %s1, %s223
      %p225 = pneg %p84
      %p226 = pneg %p81
      %s227 = smul.u32 8, %s21
      %p228 = scmp.lt.s32.totalorder %s19, 1
      %s229 = scalar_select %p228, %s19, 1
      %p230 = scmp.lt.s32.totalorder %s227, 7
      %s231 = scalar_select %p230, %s227, 7
      %s232 = smul.addr %s229, 8
      %s233 = sadd.s32 %s231, %s232
      %s234 = smul.addr %s233, 4
      %s235 = scalar_lea.vmem %s2, %s234
      %p236 = pneg %p112
      %p237 = pneg %p109
      %p238 = pneg %p140
      %p239 = pneg %p137
      %s240 = smul.u32 8, %s20
      %p241 = scmp.lt.s32.totalorder %s19, 1
      %s242 = scalar_select %p241, %s19, 1
      %p243 = scmp.lt.s32.totalorder %s240, 7
      %s244 = scalar_select %p243, %s240, 7
      %s245 = smul.addr %s242, 8
      %s246 = sadd.s32 %s244, %s245
      %s247 = smul.addr %s246, 8
      %s248 = scalar_lea.vmem %s3, %s247
      %s249 = smul.u32 8, %s20
      %p250 = scmp.lt.s32.totalorder %s19, 1
      %s251 = scalar_select %p250, %s19, 1
      %p252 = scmp.lt.s32.totalorder %s249, 7
      %s253 = scalar_select %p252, %s249, 7
      %s254 = smul.addr %s251, 8
      %s255 = sadd.s32 %s253, %s254
      %s256 = smul.addr %s255, 4
      %s257 = scalar_lea.vmem %s0, %s256
      %s258 = smul.u32 8, %s20
      %s259 = smul.u32 8, %s21
      %p260 = scmp.lt.s32.totalorder %s19, 1
      %s261 = scalar_select %p260, %s19, 1
      %p262 = scmp.lt.s32.totalorder %s259, 7
      %s263 = scalar_select %p262, %s259, 7
      %s264 = smul.addr %s261, 8
      %s265 = sadd.s32 %s263, %s264
      %s266 = smul.addr %s265, 4
      %s267 = scalar_lea.vmem %s1, %s266
      %s268 = smul.u32 8, %s21
      %s269 = smul.u32 8, %s21
      %p270 = scmp.lt.s32.totalorder %s19, 1
      %s271 = scalar_select %p270, %s19, 1
      %p272 = scmp.lt.s32.totalorder %s269, 7
      %s273 = scalar_select %p272, %s269, 7
      %s274 = smul.addr %s271, 8
      %s275 = sadd.s32 %s273, %s274
      %s276 = smul.addr %s275, 4
      %s277 = scalar_lea.vmem %s2, %s276
      %s278 = smul.u32 8, %s21
      %s279 = smul.u32 8, %s20
      %p280 = scmp.lt.s32.totalorder %s19, 1
      %s281 = scalar_select %p280, %s19, 1
      %p282 = scmp.lt.s32.totalorder %s279, 7
      %s283 = scalar_select %p282, %s279, 7
      %s284 = smul.addr %s281, 8
      %s285 = sadd.s32 %s283, %s284
      %s286 = smul.addr %s285, 8
      %s287 = scalar_lea.vmem %s3, %s286
      %s288 = smul.u32 8, %s20
      %p290 = scmp.eq.s32.totalorder %s21, 0
      // Predicated region
      $region33: #{rw_module_forward.3} parent=31 // pred_check
        %p291 = pneg %p290
      $region34: #{rw_module_forward.3} parent=31 // pred_check_branch
        %293 = sbr.rel (%p291) target = $region36
      $region35: #{rw_module_forward.3} parent=31 // pred_region
        %294 = vst [vmem:[#allocation2] sm:$0xff] -inf
        %295 = vst [vmem:[#allocation2 + $0x8] sm:$0xff] -inf
        %296 = vst [vmem:[#allocation2 + $0x10] sm:$0xff] -inf
        %297 = vst [vmem:[#allocation2 + $0x18] sm:$0xff] -inf
        %298 = vst [vmem:[#allocation2 + $0x20] sm:$0xff] -inf
        %299 = vst [vmem:[#allocation2 + $0x28] sm:$0xff] -inf
        %300 = vst [vmem:[#allocation2 + $0x30] sm:$0xff] -inf
        %301 = vst [vmem:[#allocation2 + $0x38] sm:$0xff] -inf
        %302 = vst [vmem:[#allocation3] sm:$0xff] 0.0
        %303 = vst [vmem:[#allocation3 + $0x8] sm:$0xff] 0.0
        %304 = vst [vmem:[#allocation3 + $0x10] sm:$0xff] 0.0
        %305 = vst [vmem:[#allocation3 + $0x18] sm:$0xff] 0.0
        %306 = vst [vmem:[#allocation3 + $0x20] sm:$0xff] 0.0
        %307 = vst [vmem:[#allocation3 + $0x28] sm:$0xff] 0.0
        %308 = vst [vmem:[#allocation3 + $0x30] sm:$0xff] 0.0
        %309 = vst [vmem:[#allocation3 + $0x38] sm:$0xff] 0.0
        %310 = vst [vmem:[#allocation4] sm:$0xff] 0.0
        %311 = vst [vmem:[#allocation4 + $0x8] sm:$0xff] 0.0
        %312 = vst [vmem:[#allocation4 + $0x10] sm:$0xff] 0.0
        %313 = vst [vmem:[#allocation4 + $0x18] sm:$0xff] 0.0
        %314 = vst [vmem:[#allocation4 + $0x20] sm:$0xff] 0.0
        %315 = vst [vmem:[#allocation4 + $0x28] sm:$0xff] 0.0
        %316 = vst [vmem:[#allocation4 + $0x30] sm:$0xff] 0.0
        %317 = vst [vmem:[#allocation4 + $0x38] sm:$0xff] 0.0
      $region36: #{rw_module_forward.3} parent=31 // pred_fallthru
        _
      %v318 = vld [vmem:[%s257] sm:$0xf]
      %v319 = vld [vmem:[%s257 + $0x4] sm:$0xf]
      %v320 = vld [vmem:[%s257 + $0x8] sm:$0xf]
      %v321 = vld [vmem:[%s257 + $0xc] sm:$0xf]
      %v322 = vld [vmem:[%s257 + $0x10] sm:$0xf]
      %v323 = vld [vmem:[%s257 + $0x14] sm:$0xf]
      %v324 = vld [vmem:[%s257 + $0x18] sm:$0xf]
      %v325 = vld [vmem:[%s257 + $0x1c] sm:$0xf]
      %v326 = vld [vmem:[%s267] sm:$0xf]
      %v327 = vld [vmem:[%s267 + $0x4] sm:$0xf]
      %v328 = vld [vmem:[%s267 + $0x8] sm:$0xf]
      %v329 = vld [vmem:[%s267 + $0xc] sm:$0xf]
      %v330 = vld [vmem:[%s267 + $0x10] sm:$0xf]
      %v331 = vld [vmem:[%s267 + $0x14] sm:$0xf]
      %v332 = vld [vmem:[%s267 + $0x18] sm:$0xf]
      %v333 = vld [vmem:[%s267 + $0x1c] sm:$0xf]
      %v342 = vunpack.c.l.b16 %v318
      %v343 = vunpack.c.l.b16 %v319
      %v344 = vunpack.c.l.b16 %v320
      %v345 = vunpack.c.l.b16 %v321
      %v346 = vunpack.c.l.b16 %v322
      %v347 = vunpack.c.l.b16 %v323
      %v348 = vunpack.c.l.b16 %v324
      %v349 = vunpack.c.l.b16 %v325
      %v350 = vpack.c.b16 %v343, %v342
      %v351 = vpack.c.b16 %v345, %v344
      %v352 = vpack.c.b16 %v347, %v346
      %v353 = vpack.c.b16 %v349, %v348
      %v366 = vunpack.c.l.b16 %v326
      %v367 = vunpack.c.l.b16 %v327
      %v368 = vunpack.c.l.b16 %v328
      %v369 = vunpack.c.l.b16 %v329
      %v370 = vunpack.c.l.b16 %v330
      %v371 = vunpack.c.l.b16 %v331
      %v372 = vunpack.c.l.b16 %v332
      %v373 = vunpack.c.l.b16 %v333
      %v374 = vpack.c.b16 %v367, %v366
      %v375 = vpack.c.b16 %v369, %v368
      %v376 = vpack.c.b16 %v371, %v370
      %v377 = vpack.c.b16 %v373, %v372
      %382 = vmatprep.subr.bf16.mxu0 0
      %383 = vmatpush1.bf16.xpose.msra.mxu0 %v374
      %384 = vmatprep.subr.bf16.mxu0 0
      %385 = vmatpush1.bf16.xpose.msra.mxu0 %v375
      %386 = vmatprep.subr.bf16.mxu0 0
      %387 = vmatpush1.bf16.xpose.msra.mxu0 %v376
      %388 = vmatprep.subr.bf16.mxu0 0
      %389 = vmatpush1.bf16.xpose.msra.mxu0 %v377
      %390 = vmatprep.subr.bf16.mxu0 0
      %391 = vmatpush1.bf16.xpose.msra.mxu0 0
      %392 = vmatprep.subr.bf16.mxu0 0
      %393 = vmatpush1.bf16.xpose.msra.mxu0 0
      %394 = vmatprep.subr.bf16.mxu0 0
      %395 = vmatpush1.bf16.xpose.msra.mxu0 0
      %396 = vmatprep.subr.bf16.mxu0 0
      %397 = vmatpush1.bf16.xpose.msra.mxu0 0
      %398 = vmatprep.subr.bf16.mxu0 0
      %399 = vmatpush1.bf16.xpose.msra.mxu0 0
      %400 = vmatprep.subr.bf16.mxu0 0
      %401 = vmatpush1.bf16.xpose.msra.mxu0 0
      %402 = vmatprep.subr.bf16.mxu0 0
      %403 = vmatpush1.bf16.xpose.msra.mxu0 0
      %404 = vmatprep.subr.bf16.mxu0 0
      %405 = vmatpush1.bf16.xpose.msra.mxu0 0
      %406 = vmatprep.subr.bf16.mxu0 0
      %407 = vmatpush1.bf16.xpose.msra.mxu0 0
      %408 = vmatprep.subr.bf16.mxu0 0
      %409 = vmatpush1.bf16.xpose.msra.mxu0 0
      %410 = vmatprep.subr.bf16.mxu0 0
      %411 = vmatpush1.bf16.xpose.msra.mxu0 0
      %412 = vmatprep.subr.bf16.mxu0 0
      %413 = vmatpush1.bf16.xpose.msra.mxu0 0
      %414 = vmatprep.mubr.bf16.mxu0 0
      %415 = vmatmul.mubr.bf16.gmra.mrb[0].mxu0 %v350
      %v416 = vpop.f32.mrb[0].mxu0
      %v417 = vadd.f32 0.0, %v416
      %v418 = vpop.f32.mrb[0].mxu0
      %v419 = vpop.f32.mrb[0].mxu0
      %v420 = vadd.f32 0.0, %v419
      %v421 = vpop.f32.mrb[0].mxu0
      %422 = vmatprep.mubr.bf16.mxu0 0
      %423 = vmatmul.mubr.bf16.gmra.mrb[0].mxu0 %v351
      %v424 = vpop.f32.mrb[0].mxu0
      %v425 = vadd.f32 0.0, %v424
      %v426 = vpop.f32.mrb[0].mxu0
      %v427 = vpop.f32.mrb[0].mxu0
      %v428 = vadd.f32 0.0, %v427
      %v429 = vpop.f32.mrb[0].mxu0
      %430 = vmatprep.mubr.bf16.mxu0 0
      %431 = vmatmul.mubr.bf16.gmra.mrb[0].mxu0 %v352
      %v432 = vpop.f32.mrb[0].mxu0
      %v433 = vadd.f32 0.0, %v432
      %v434 = vpop.f32.mrb[0].mxu0
      %v435 = vpop.f32.mrb[0].mxu0
      %v436 = vadd.f32 0.0, %v435
      %v437 = vpop.f32.mrb[0].mxu0
      %438 = vmatprep.mubr.bf16.mxu0 0
      %439 = vmatmul.mubr.bf16.gmra.mrb[0].mxu0 %v353
      %v440 = vpop.f32.mrb[0].mxu0
      %v441 = vadd.f32 0.0, %v440
      %v442 = vpop.f32.mrb[0].mxu0
      %v443 = vpop.f32.mrb[0].mxu0
      %v444 = vadd.f32 0.0, %v443
      %v445 = vpop.f32.mrb[0].mxu0
      %446 = vdwg.mxu0
      %v447 = vld [vmem:[#allocation2] sm:$0xff]
      %v448 = vld [vmem:[#allocation2 + $0x8] sm:$0xff]
      %v449 = vld [vmem:[#allocation2 + $0x10] sm:$0xff]
      %v450 = vld [vmem:[#allocation2 + $0x18] sm:$0xff]
      %v451 = vld [vmem:[#allocation2 + $0x20] sm:$0xff]
      %v452 = vld [vmem:[#allocation2 + $0x28] sm:$0xff]
      %v453 = vld [vmem:[#allocation2 + $0x30] sm:$0xff]
      %v454 = vld [vmem:[#allocation2 + $0x38] sm:$0xff]
      %v455 = vld [vmem:[#allocation3] sm:$0xff]
      %v456 = vld [vmem:[#allocation3 + $0x8] sm:$0xff]
      %v457 = vld [vmem:[#allocation3 + $0x10] sm:$0xff]
      %v458 = vld [vmem:[#allocation3 + $0x18] sm:$0xff]
      %v459 = vld [vmem:[#allocation3 + $0x20] sm:$0xff]
      %v460 = vld [vmem:[#allocation3 + $0x28] sm:$0xff]
      %v461 = vld [vmem:[#allocation3 + $0x30] sm:$0xff]
      %v462 = vld [vmem:[#allocation3 + $0x38] sm:$0xff]
      %vm463 = vcmask 523264
      %v464 = vsel %vm463, %v417, -inf
      %465 = vmax.xlane.f32.xlu0 %v464
      %v466 = vpop.xlane.xlu0 %465
      %v467 = vsel %vm463, %v420, -inf
      %468 = vmax.xlane.f32.xlu0 %v467
      %v469 = vpop.xlane.xlu0 %468
      %v470 = vsel %vm463, %v425, -inf
      %471 = vmax.xlane.f32.xlu0 %v470
      %v472 = vpop.xlane.xlu0 %471
      %v473 = vsel %vm463, %v428, -inf
      %474 = vmax.xlane.f32.xlu0 %v473
      %v475 = vpop.xlane.xlu0 %474
      %v476 = vsel %vm463, %v433, -inf
      %477 = vmax.xlane.f32.xlu0 %v476
      %v478 = vpop.xlane.xlu0 %477
      %v479 = vsel %vm463, %v436, -inf
      %480 = vmax.xlane.f32.xlu0 %v479
      %v481 = vpop.xlane.xlu0 %480
      %v482 = vsel %vm463, %v441, -inf
      %483 = vmax.xlane.f32.xlu0 %v482
      %v484 = vpop.xlane.xlu0 %483
      %v485 = vsel %vm463, %v444, -inf
      %486 = vmax.xlane.f32.xlu0 %v485
      %v487 = vpop.xlane.xlu0 %486
      %v488 = vmax.f32 %v447, %v466
      %v489 = vmax.f32 %v448, %v469
      %v490 = vmax.f32 %v449, %v472
      %v491 = vmax.f32 %v450, %v475
      %v492 = vmax.f32 %v451, %v478
      %v493 = vmax.f32 %v452, %v481
      %v494 = vmax.f32 %v453, %v484
      %v495 = vmax.f32 %v454, %v487
      %v496 = vsub.f32 %v447, %v488
      %v497 = vsub.f32 %v448, %v489
      %v498 = vsub.f32 %v449, %v490
      %v499 = vsub.f32 %v450, %v491
      %v500 = vsub.f32 %v451, %v492
      %v501 = vsub.f32 %v452, %v493
      %v502 = vsub.f32 %v453, %v494
      %v503 = vsub.f32 %v454, %v495
      %v504 = vmul.f32 %v496, 1.442695
      %v505 = vpow.pop %v504
      %v506 = vmul.f32 %v497, 1.442695
      %v507 = vpow.pop %v506
      %v508 = vmul.f32 %v498, 1.442695
      %v509 = vpow.pop %v508
      %v510 = vmul.f32 %v499, 1.442695
      %v511 = vpow.pop %v510
      %v512 = vmul.f32 %v500, 1.442695
      %v513 = vpow.pop %v512
      %v514 = vmul.f32 %v501, 1.442695
      %v515 = vpow.pop %v514
      %v516 = vmul.f32 %v502, 1.442695
      %v517 = vpow.pop %v516
      %v518 = vmul.f32 %v503, 1.442695
      %v519 = vpow.pop %v518
      %521 = vset.pattern.permute.xlu0 0
      %522 = vperm.xlu0 %521, %v488
      %v523 = vpop.permute.xlu0 %522
      %526 = vset.pattern.permute.xlu0 0
      %527 = vperm.xlu0 %526, %v489
      %v528 = vpop.permute.xlu0 %527
      %531 = vset.pattern.permute.xlu0 0
      %532 = vperm.xlu0 %531, %v490
      %v533 = vpop.permute.xlu0 %532
      %536 = vset.pattern.permute.xlu0 0
      %537 = vperm.xlu0 %536, %v491
      %v538 = vpop.permute.xlu0 %537
      %541 = vset.pattern.permute.xlu0 0
      %542 = vperm.xlu0 %541, %v492
      %v543 = vpop.permute.xlu0 %542
      %546 = vset.pattern.permute.xlu0 0
      %547 = vperm.xlu0 %546, %v493
      %v548 = vpop.permute.xlu0 %547
      %551 = vset.pattern.permute.xlu0 0
      %552 = vperm.xlu0 %551, %v494
      %v553 = vpop.permute.xlu0 %552
      %556 = vset.pattern.permute.xlu0 0
      %557 = vperm.xlu0 %556, %v495
      %v558 = vpop.permute.xlu0 %557
      %v560 = vsub.f32 %v417, %v523
      %v561 = vsub.f32 %v420, %v528
      %v562 = vsub.f32 %v425, %v533
      %v563 = vsub.f32 %v428, %v538
      %v564 = vsub.f32 %v433, %v543
      %v565 = vsub.f32 %v436, %v548
      %v566 = vsub.f32 %v441, %v553
      %v567 = vsub.f32 %v444, %v558
      %v568 = vmul.f32 %v560, 1.442695
      %v569 = vpow.pop %v568
      %v570 = vmul.f32 %v561, 1.442695
      %v571 = vpow.pop %v570
      %v572 = vmul.f32 %v562, 1.442695
      %v573 = vpow.pop %v572
      %v574 = vmul.f32 %v563, 1.442695
      %v575 = vpow.pop %v574
      %v576 = vmul.f32 %v564, 1.442695
      %v577 = vpow.pop %v576
      %v578 = vmul.f32 %v565, 1.442695
      %v579 = vpow.pop %v578
      %v580 = vmul.f32 %v566, 1.442695
      %v581 = vpow.pop %v580
      %v582 = vmul.f32 %v567, 1.442695
      %v583 = vpow.pop %v582
      %v584 = vmul.f32 %v505, %v455
      %v585 = vmul.f32 %v507, %v456
      %v586 = vmul.f32 %v509, %v457
      %v587 = vmul.f32 %v511, %v458
      %v588 = vmul.f32 %v513, %v459
      %v589 = vmul.f32 %v515, %v460
      %v590 = vmul.f32 %v517, %v461
      %v591 = vmul.f32 %v519, %v462
      %v592 = vsel %vm463, %v569, 0.0
      %593 = vadd.xlane.f32.xlu0 %v592
      %v594 = vpop.xlane.xlu0 %593
      %v595 = vsel %vm463, %v571, 0.0
      %596 = vadd.xlane.f32.xlu0 %v595
      %v597 = vpop.xlane.xlu0 %596
      %v598 = vsel %vm463, %v573, 0.0
      %599 = vadd.xlane.f32.xlu0 %v598
      %v600 = vpop.xlane.xlu0 %599
      %v601 = vsel %vm463, %v575, 0.0
      %602 = vadd.xlane.f32.xlu0 %v601
      %v603 = vpop.xlane.xlu0 %602
      %v604 = vsel %vm463, %v577, 0.0
      %605 = vadd.xlane.f32.xlu0 %v604
      %v606 = vpop.xlane.xlu0 %605
      %v607 = vsel %vm463, %v579, 0.0
      %608 = vadd.xlane.f32.xlu0 %v607
      %v609 = vpop.xlane.xlu0 %608
      %v610 = vsel %vm463, %v581, 0.0
      %611 = vadd.xlane.f32.xlu0 %v610
      %v612 = vpop.xlane.xlu0 %611
      %v613 = vsel %vm463, %v583, 0.0
      %614 = vadd.xlane.f32.xlu0 %v613
      %v615 = vpop.xlane.xlu0 %614
      %v616 = vadd.f32 %v584, %v594
      %v617 = vadd.f32 %v585, %v597
      %v618 = vadd.f32 %v586, %v600
      %v619 = vadd.f32 %v587, %v603
      %v620 = vadd.f32 %v588, %v606
      %v621 = vadd.f32 %v589, %v609
      %v622 = vadd.f32 %v590, %v612
      %v623 = vadd.f32 %v591, %v615
      %v624 = vld [vmem:[#allocation4] sm:$0xff]
      %v625 = vld [vmem:[#allocation4 + $0x8] sm:$0xff]
      %v626 = vld [vmem:[#allocation4 + $0x10] sm:$0xff]
      %v627 = vld [vmem:[#allocation4 + $0x18] sm:$0xff]
      %v628 = vld [vmem:[#allocation4 + $0x20] sm:$0xff]
      %v629 = vld [vmem:[#allocation4 + $0x28] sm:$0xff]
      %v630 = vld [vmem:[#allocation4 + $0x30] sm:$0xff]
      %v631 = vld [vmem:[#allocation4 + $0x38] sm:$0xff]
      %633 = vset.pattern.permute.xlu0 0
      %634 = vperm.xlu0 %633, %v505
      %v635 = vpop.permute.xlu0 %634
      %638 = vset.pattern.permute.xlu0 0
      %639 = vperm.xlu0 %638, %v507
      %v640 = vpop.permute.xlu0 %639
      %643 = vset.pattern.permute.xlu0 0
      %644 = vperm.xlu0 %643, %v509
      %v645 = vpop.permute.xlu0 %644
      %648 = vset.pattern.permute.xlu0 0
      %649 = vperm.xlu0 %648, %v511
      %v650 = vpop.permute.xlu0 %649
      %653 = vset.pattern.permute.xlu0 0
      %654 = vperm.xlu0 %653, %v513
      %v655 = vpop.permute.xlu0 %654
      %658 = vset.pattern.permute.xlu0 0
      %659 = vperm.xlu0 %658, %v515
      %v660 = vpop.permute.xlu0 %659
      %663 = vset.pattern.permute.xlu0 0
      %664 = vperm.xlu0 %663, %v517
      %v665 = vpop.permute.xlu0 %664
      %668 = vset.pattern.permute.xlu0 0
      %669 = vperm.xlu0 %668, %v519
      %v670 = vpop.permute.xlu0 %669
      %v672 = vmul.f32 %v635, %v624
      %v673 = vmul.f32 %v640, %v625
      %v674 = vmul.f32 %v645, %v626
      %v675 = vmul.f32 %v650, %v627
      %v676 = vmul.f32 %v655, %v628
      %v677 = vmul.f32 %v660, %v629
      %v678 = vmul.f32 %v665, %v630
      %v679 = vmul.f32 %v670, %v631
      %v680 = vpack.c.bf16 %v571, %v569
      %v681 = vpack.c.bf16 %v575, %v573
      %v682 = vpack.c.bf16 %v579, %v577
      %v683 = vpack.c.bf16 %v583, %v581
      %v684 = vld [vmem:[%s277] sm:$0xf]
      %v685 = vld [vmem:[%s277 + $0x4] sm:$0xf]
      %v686 = vld [vmem:[%s277 + $0x8] sm:$0xf]
      %v687 = vld [vmem:[%s277 + $0xc] sm:$0xf]
      %v688 = vld [vmem:[%s277 + $0x10] sm:$0xf]
      %v689 = vld [vmem:[%s277 + $0x14] sm:$0xf]
      %v690 = vld [vmem:[%s277 + $0x18] sm:$0xf]
      %v691 = vld [vmem:[%s277 + $0x1c] sm:$0xf]
      %v700 = vunpack.c.l.b16 %v684
      %v701 = vunpack.c.l.b16 %v685
      %v702 = vunpack.c.l.b16 %v686
      %v703 = vunpack.c.l.b16 %v687
      %v704 = vunpack.c.l.b16 %v688
      %v705 = vunpack.c.l.b16 %v689
      %v706 = vunpack.c.l.b16 %v690
      %v707 = vunpack.c.l.b16 %v691
      %v708 = vpack.c.b16 %v701, %v700
      %v709 = vpack.c.b16 %v703, %v702
      %v710 = vpack.c.b16 %v705, %v704
      %v711 = vpack.c.b16 %v707, %v706
      %v717 = vsel %vm463, %v680, 0
      %v720 = vsel %vm463, %v681, 0
      %v723 = vsel %vm463, %v682, 0
      %v726 = vsel %vm463, %v683, 0
      %728 = vmatprep.subr.bf16.mxu0 0
      %729 = vmatpush1.bf16.msra.mxu0 %v708
      %730 = vmatprep.subr.bf16.mxu0 0
      %731 = vmatpush1.bf16.msra.mxu0 %v709
      %732 = vmatprep.subr.bf16.mxu0 0
      %733 = vmatpush1.bf16.msra.mxu0 %v710
      %734 = vmatprep.subr.bf16.mxu0 0
      %735 = vmatpush1.bf16.msra.mxu0 %v711
      %736 = vmatprep.subr.bf16.mxu0 0
      %737 = vmatpush1.bf16.msra.mxu0 0
      %738 = vmatprep.subr.bf16.mxu0 0
      %739 = vmatpush1.bf16.msra.mxu0 0
      %740 = vmatprep.subr.bf16.mxu0 0
      %741 = vmatpush1.bf16.msra.mxu0 0
      %742 = vmatprep.subr.bf16.mxu0 0
      %743 = vmatpush1.bf16.msra.mxu0 0
      %744 = vmatprep.subr.bf16.mxu0 0
      %745 = vmatpush1.bf16.msra.mxu0 0
      %746 = vmatprep.subr.bf16.mxu0 0
      %747 = vmatpush1.bf16.msra.mxu0 0
      %748 = vmatprep.subr.bf16.mxu0 0
      %749 = vmatpush1.bf16.msra.mxu0 0
      %750 = vmatprep.subr.bf16.mxu0 0
      %751 = vmatpush1.bf16.msra.mxu0 0
      %752 = vmatprep.subr.bf16.mxu0 0
      %753 = vmatpush1.bf16.msra.mxu0 0
      %754 = vmatprep.subr.bf16.mxu0 0
      %755 = vmatpush1.bf16.msra.mxu0 0
      %756 = vmatprep.subr.bf16.mxu0 0
      %757 = vmatpush1.bf16.msra.mxu0 0
      %758 = vmatprep.subr.bf16.mxu0 0
      %759 = vmatpush1.bf16.msra.mxu0 0
      %760 = vmatprep.mubr.bf16.mxu0 0
      %761 = vmatmul.mubr.bf16.gmra.mrb[0].mxu0 %v717
      %v762 = vpop.f32.mrb[0].mxu0
      %v763 = vadd.f32 0.0, %v762
      %v764 = vpop.f32.mrb[0].mxu0
      %v765 = vpop.f32.mrb[0].mxu0
      %v766 = vadd.f32 0.0, %v765
      %v767 = vpop.f32.mrb[0].mxu0
      %768 = vmatprep.mubr.bf16.mxu0 0
      %769 = vmatmul.mubr.bf16.gmra.mrb[0].mxu0 %v720
      %v770 = vpop.f32.mrb[0].mxu0
      %v771 = vadd.f32 0.0, %v770
      %v772 = vpop.f32.mrb[0].mxu0
      %v773 = vpop.f32.mrb[0].mxu0
      %v774 = vadd.f32 0.0, %v773
      %v775 = vpop.f32.mrb[0].mxu0
      %776 = vmatprep.mubr.bf16.mxu0 0
      %777 = vmatmul.mubr.bf16.gmra.mrb[0].mxu0 %v723
      %v778 = vpop.f32.mrb[0].mxu0
      %v779 = vadd.f32 0.0, %v778
      %v780 = vpop.f32.mrb[0].mxu0
      %v781 = vpop.f32.mrb[0].mxu0
      %v782 = vadd.f32 0.0, %v781
      %v783 = vpop.f32.mrb[0].mxu0
      %784 = vmatprep.mubr.bf16.mxu0 0
      %785 = vmatmul.mubr.bf16.gmra.mrb[0].mxu0 %v726
      %v786 = vpop.f32.mrb[0].mxu0
      %v787 = vadd.f32 0.0, %v786
      %v788 = vpop.f32.mrb[0].mxu0
      %v789 = vpop.f32.mrb[0].mxu0
      %v790 = vadd.f32 0.0, %v789
      %v791 = vpop.f32.mrb[0].mxu0
      %792 = vdwg.mxu0
      %v793 = vadd.f32 %v672, %v763
      %v794 = vadd.f32 %v673, %v766
      %v795 = vadd.f32 %v674, %v771
      %v796 = vadd.f32 %v675, %v774
      %v797 = vadd.f32 %v676, %v779
      %v798 = vadd.f32 %v677, %v782
      %v799 = vadd.f32 %v678, %v787
      %v800 = vadd.f32 %v679, %v790
      %801 = vst [vmem:[#allocation4] sm:$0xff] %v793
      %802 = vst [vmem:[#allocation4 + $0x8] sm:$0xff] %v794
      %803 = vst [vmem:[#allocation4 + $0x10] sm:$0xff] %v795
      %804 = vst [vmem:[#allocation4 + $0x18] sm:$0xff] %v796
      %805 = vst [vmem:[#allocation4 + $0x20] sm:$0xff] %v797
      %806 = vst [vmem:[#allocation4 + $0x28] sm:$0xff] %v798
      %807 = vst [vmem:[#allocation4 + $0x30] sm:$0xff] %v799
      %808 = vst [vmem:[#allocation4 + $0x38] sm:$0xff] %v800
      %809 = vst [vmem:[#allocation2] sm:$0xff] %v523
      %810 = vst [vmem:[#allocation2 + $0x8] sm:$0xff] %v528
      %811 = vst [vmem:[#allocation2 + $0x10] sm:$0xff] %v533
      %812 = vst [vmem:[#allocation2 + $0x18] sm:$0xff] %v538
      %813 = vst [vmem:[#allocation2 + $0x20] sm:$0xff] %v543
      %814 = vst [vmem:[#allocation2 + $0x28] sm:$0xff] %v548
      %815 = vst [vmem:[#allocation2 + $0x30] sm:$0xff] %v553
      %816 = vst [vmem:[#allocation2 + $0x38] sm:$0xff] %v558
      %818 = vset.pattern.permute.xlu0 0
      %819 = vperm.xlu0 %818, %v616
      %v820 = vpop.permute.xlu0 %819
      %823 = vset.pattern.permute.xlu0 0
      %824 = vperm.xlu0 %823, %v617
      %v825 = vpop.permute.xlu0 %824
      %828 = vset.pattern.permute.xlu0 0
      %829 = vperm.xlu0 %828, %v618
      %v830 = vpop.permute.xlu0 %829
      %833 = vset.pattern.permute.xlu0 0
      %834 = vperm.xlu0 %833, %v619
      %v835 = vpop.permute.xlu0 %834
      %838 = vset.pattern.permute.xlu0 0
      %839 = vperm.xlu0 %838, %v620
      %v840 = vpop.permute.xlu0 %839
      %843 = vset.pattern.permute.xlu0 0
      %844 = vperm.xlu0 %843, %v621
      %v845 = vpop.permute.xlu0 %844
      %848 = vset.pattern.permute.xlu0 0
      %849 = vperm.xlu0 %848, %v622
      %v850 = vpop.permute.xlu0 %849
      %853 = vset.pattern.permute.xlu0 0
      %854 = vperm.xlu0 %853, %v623
      %v855 = vpop.permute.xlu0 %854
      %857 = vst [vmem:[#allocation3] sm:$0xff] %v820
      %858 = vst [vmem:[#allocation3 + $0x8] sm:$0xff] %v825
      %859 = vst [vmem:[#allocation3 + $0x10] sm:$0xff] %v830
      %860 = vst [vmem:[#allocation3 + $0x18] sm:$0xff] %v835
      %861 = vst [vmem:[#allocation3 + $0x20] sm:$0xff] %v840
      %862 = vst [vmem:[#allocation3 + $0x28] sm:$0xff] %v845
      %863 = vst [vmem:[#allocation3 + $0x30] sm:$0xff] %v850
      %864 = vst [vmem:[#allocation3 + $0x38] sm:$0xff] %v855
      // Predicated region
      $region37: #{rw_module_forward.3} parent=31 // pred_check
        %p865 = pneg %p290
      $region38: #{rw_module_forward.3} parent=31 // pred_check_branch
        %867 = sbr.rel (%p865) target = $region40
      $region39: #{rw_module_forward.3} parent=31 // pred_region
        %v868 = vld [vmem:[#allocation4] sm:$0xff]
        %v869 = vld [vmem:[#allocation4 + $0x8] sm:$0xff]
        %v870 = vld [vmem:[#allocation4 + $0x10] sm:$0xff]
        %v871 = vld [vmem:[#allocation4 + $0x18] sm:$0xff]
        %v872 = vld [vmem:[#allocation4 + $0x20] sm:$0xff]
        %v873 = vld [vmem:[#allocation4 + $0x28] sm:$0xff]
        %v874 = vld [vmem:[#allocation4 + $0x30] sm:$0xff]
        %v875 = vld [vmem:[#allocation4 + $0x38] sm:$0xff]
        %v876 = vld [vmem:[#allocation3] sm:$0xff]
        %v877 = vld [vmem:[#allocation3 + $0x8] sm:$0xff]
        %v878 = vld [vmem:[#allocation3 + $0x10] sm:$0xff]
        %v879 = vld [vmem:[#allocation3 + $0x18] sm:$0xff]
        %v880 = vld [vmem:[#allocation3 + $0x20] sm:$0xff]
        %v881 = vld [vmem:[#allocation3 + $0x28] sm:$0xff]
        %v882 = vld [vmem:[#allocation3 + $0x30] sm:$0xff]
        %v883 = vld [vmem:[#allocation3 + $0x38] sm:$0xff]
        %v884 = vrcp.pop %v876
        %v885 = vrcp.pop %v877
        %v886 = vrcp.pop %v878
        %v887 = vrcp.pop %v879
        %v888 = vrcp.pop %v880
        %v889 = vrcp.pop %v881
        %v890 = vrcp.pop %v882
        %v891 = vrcp.pop %v883
        %893 = vset.pattern.permute.xlu0 0
        %894 = vperm.xlu0 %893, %v884
        %v895 = vpop.permute.xlu0 %894
        %898 = vset.pattern.permute.xlu0 0
        %899 = vperm.xlu0 %898, %v885
        %v900 = vpop.permute.xlu0 %899
        %903 = vset.pattern.permute.xlu0 0
        %904 = vperm.xlu0 %903, %v886
        %v905 = vpop.permute.xlu0 %904
        %908 = vset.pattern.permute.xlu0 0
        %909 = vperm.xlu0 %908, %v887
        %v910 = vpop.permute.xlu0 %909
        %913 = vset.pattern.permute.xlu0 0
        %914 = vperm.xlu0 %913, %v888
        %v915 = vpop.permute.xlu0 %914
        %918 = vset.pattern.permute.xlu0 0
        %919 = vperm.xlu0 %918, %v889
        %v920 = vpop.permute.xlu0 %919
        %923 = vset.pattern.permute.xlu0 0
        %924 = vperm.xlu0 %923, %v890
        %v925 = vpop.permute.xlu0 %924
        %928 = vset.pattern.permute.xlu0 0
        %929 = vperm.xlu0 %928, %v891
        %v930 = vpop.permute.xlu0 %929
        %v932 = vmul.f32 %v868, %v895
        %v933 = vmul.f32 %v869, %v900
        %v934 = vmul.f32 %v870, %v905
        %v935 = vmul.f32 %v871, %v910
        %v936 = vmul.f32 %v872, %v915
        %v937 = vmul.f32 %v873, %v920
        %v938 = vmul.f32 %v874, %v925
        %v939 = vmul.f32 %v875, %v930
        %940 = vst [vmem:[%s287] sm:$0xff] %v932
        %941 = vst [vmem:[%s287 + $0x8] sm:$0xff] %v933
        %942 = vst [vmem:[%s287 + $0x10] sm:$0xff] %v934
        %943 = vst [vmem:[%s287 + $0x18] sm:$0xff] %v935
        %944 = vst [vmem:[%s287 + $0x20] sm:$0xff] %v936
        %945 = vst [vmem:[%s287 + $0x28] sm:$0xff] %v937
        %946 = vst [vmem:[%s287 + $0x30] sm:$0xff] %v938
        %947 = vst [vmem:[%s287 + $0x38] sm:$0xff] %v939
      $region40: #{rw_module_forward.3} parent=31 // pred_fallthru
        _
      %s948 = smul.u32 8, %s20
      %p949 = scmp.lt.s32.totalorder %s19, 1
      %s950 = scalar_select %p949, %s19, 1
      %p951 = scmp.lt.s32.totalorder %s948, 7
      %s952 = scalar_select %p951, %s948, 7
      %s953 = smul.addr %s950, 8
      %s954 = sadd.s32 %s952, %s953
      %s955 = smul.addr %s954, 8
      %s956 = scalar_lea.vmem %s3, %s955
      // Predicated region
      $region41: #{rw_module_forward.3} parent=31 // pred_check
        %p957 = pneg %p137
      $region42: #{rw_module_forward.3} parent=31 // pred_check_branch
        %959 = sbr.rel (%p957) target = $region44
      $region43: #{rw_module_forward.3} parent=31 // pred_region
        %s960 = smul.u32 8, %s20
      $region44: #{rw_module_forward.3} parent=31 // pred_fallthru
        _
    $region32: #{rw_module_forward.3} parent=5 // pred_fallthru
      _
    %p961 = scmp.le.s32.totalorder 2, %s9
    // Predicated region
    $region45: #{rw_module_forward.3} parent=5 // pred_check
      %p962 = pneg %p961
    $region46: #{rw_module_forward.3} parent=5 // pred_check_branch
      %964 = sbr.rel (%p962) target = $region48
    $region47: #{rw_module_forward.3} parent=5 // pred_region
      %s965 = ssub.s32 %s9, 2
      // Predicated region
      $region49: #{rw_module_forward.3} parent=47 // pred_check
        %p966 = pneg %p143
      $region50: #{rw_module_forward.3} parent=47 // pred_check_branch
        %968 = sbr.rel (%p966) target = $region52
      $region51: #{rw_module_forward.3} parent=47 // pred_region
        %s969 = smul.u32 8, %s23
        %p970 = scmp.lt.s32.totalorder %s22, 1
        %s971 = scalar_select %p970, %s22, 1
        %p972 = scmp.lt.s32.totalorder %s969, 7
        %s973 = scalar_select %p972, %s969, 7
        %s974 = smul.addr %s971, 8
        %s975 = sadd.s32 %s973, %s974
        %s976 = smul.addr %s975, 8
        %s977 = scalar_lea.vmem %s3, %s976
      $region52: #{rw_module_forward.3} parent=47 // pred_fallthru
        _
    $region48: #{rw_module_forward.3} parent=5 // pred_fallthru
      _
  $region6: #{rw_module_forward.3} parent=0 // loop_footer
    %s13 = sadd.s32 1, %s9
  $region7: #{rw_module_forward.3} parent=0 // loop_footer_branch
    %8 = sbr.rel target = $region3
  $region8: #{rw_module_forward.3} parent=0 // loop_exit
    _

</llo_original>
